<compile_context>
chip_gen: v7x
topology: tpu7x:2x2x1
jax: 0.10.0
libtpu: 0.0.40
codegen_flags: <defaults>
</compile_context>

<pallas_src>
import functools
import math

import jax
import jax.numpy as jnp
from jax.experimental import pallas as pl
from jax.experimental.pallas import tpu as pltpu

IN_FEATURES = 768
MIDDLE_SIZE = 512
OUT_FEATURES = 64
FC2_OUT = OUT_FEATURES * 4           # 256
POOL_OUT = 64                        # nn.AdaptiveAvgPool1d(64)
POOL_WIN = MIDDLE_SIZE // POOL_OUT   # 8 (exact, non-overlapping windows)
OUT_PAD = 128                        # lane-dense output slab (sliced back to 64)

_INV_SQRT2 = 1.0 / math.sqrt(2.0)


def _round_up(n, m):
    return (n + m - 1) // m * m


def projection_kernel(x_ref, w1_ref, b1_ref, w1p_ref, b1p_ref,
                      w2_ref, b2_ref, gamma_ref, beta_ref,
                      w3_ref, b3_ref, o_ref):
    x = x_ref[...]                                                     # [tb, 768]

    # baseline: adaptive-avg-pool folded into a [768, 128] weight (see wrapper).
    # Independent of h1 -> off the critical chain; rides on the MXU.
    baseline = jnp.dot(x, w1p_ref[...],
                       preferred_element_type=jnp.float32) + b1p_ref[...]   # [tb, 128]

    # fc1 (f32 accumulation)
    h1 = jnp.dot(x, w1_ref[...],
                 preferred_element_type=jnp.float32) + b1_ref[...]          # [tb, 512]

    # fc2
    h2 = jnp.dot(h1.astype(w2_ref.dtype), w2_ref[...],
                 preferred_element_type=jnp.float32) + b2_ref[...]          # [tb, 256]

    # LayerNorm over last dim (eps = 1e-5, nn.LayerNorm default) in f32
    mu = jnp.mean(h2, axis=-1, keepdims=True)
    var = jnp.mean(jnp.square(h2 - mu), axis=-1, keepdims=True)
    h2n = (h2 - mu) * jax.lax.rsqrt(var + 1e-5)
    h2n = h2n * gamma_ref[...] + beta_ref[...]

    # GELU (exact / erf form — matches PyTorch nn.GELU() default)
    g = 0.5 * h2n * (1.0 + jax.lax.erf(h2n * _INV_SQRT2))

    # fc3 (output padded to 128 lanes) + residual baseline; lane-dense store
    out = jnp.dot(g.astype(w3_ref.dtype), w3_ref[...],
                  preferred_element_type=jnp.float32) + b3_ref[...]         # [tb, 128]
    o_ref[...] = out + baseline


@functools.partial(jax.jit, static_argnames=("tb", "compute_dtype"))
def projection_forward(x, params, *, tb=256, compute_dtype=jnp.float32):
    """Fused Projection forward.

    tb: batch tile (rows). Default 256 keeps the MXU well fed; it is clamped /
        rounded for small batches. For v7x, large B with tb=256 gives a multi
        step "parallel" grid so both TensorCores are used.
    compute_dtype: dtype of the matmul operands (use jnp.bfloat16 on v6e/v7x
        for the fast path); accumulation and LayerNorm/GELU remain f32.
    """
    B, F = x.shape
    assert F == IN_FEATURES
    w1, b1, w2, b2, gamma, beta, w3, b3 = params

    # ---- fold AdaptiveAvgPool1d(64) into the fc1 weights:
    #      baseline = mean-pool(x @ W1 + b1) == x @ (W1 @ P) + b1 @ P
    pool = (jnp.kron(jnp.eye(POOL_OUT, dtype=jnp.float32),
                     jnp.ones((POOL_WIN, 1), jnp.float32)) / POOL_WIN)      # [512, 64]
    w1p = jnp.pad(w1 @ pool, ((0, 0), (0, OUT_PAD - POOL_OUT)))             # [768, 128]
    b1p = jnp.pad(b1 @ pool, ((0, 0), (0, OUT_PAD - POOL_OUT)))             # [1, 128]

    # ---- pad fc3 output dim 64 -> 128 for lane-dense stores / fuller MXU columns
    w3p = jnp.pad(w3, ((0, 0), (0, OUT_PAD - OUT_FEATURES)))                # [256, 128]
    b3p = jnp.pad(b3, ((0, 0), (0, OUT_PAD - OUT_FEATURES)))                # [1, 128]

    # ---- matmul operands in compute_dtype; biases/LN params stay f32
    cast = lambda a: a.astype(compute_dtype)
    x_c, w1_c, w1p_c, w2_c, w3_c = map(cast, (x, w1, w1p, w2, w3p))

    # ---- batch tiling: tile rounded to a multiple of 8 sublanes, batch padded
    tb_eff = _round_up(min(tb, _round_up(B, 8)), 8)
    Bp = _round_up(B, tb_eff)
    if Bp != B:
        x_c = jnp.pad(x_c, ((0, Bp - B), (0, 0)))

    # Constant index_maps -> weights stay resident in VMEM across grid steps
    # (no per-step re-DMA); total weights ~2.6 MiB so no pipeline_mode override.
    const = lambda a: pl.BlockSpec(a.shape, lambda i: (0, 0))

    out = pl.pallas_call(
        projection_kernel,
        out_shape=jax.ShapeDtypeStruct((Bp, OUT_PAD), jnp.float32),
        grid_spec=pl.GridSpec(
            grid=(Bp // tb_eff,),
            in_specs=[
                pl.BlockSpec((tb_eff, IN_FEATURES), lambda i: (i, 0)),      # x
                const(w1_c), const(b1),
                const(w1p_c), const(b1p),
                const(w2_c), const(b2),
                const(gamma), const(beta),
                const(w3_c), const(b3p),
            ],
            out_specs=pl.BlockSpec((tb_eff, OUT_PAD), lambda i: (i, 0)),
        ),
        compiler_params=pltpu.CompilerParams(
            dimension_semantics=("parallel",)),   # shards grid steps over v7x's 2 TCs
    )(x_c, w1_c, b1, w1p_c, b1p, w2_c, b2, gamma, beta, w3_c, b3p)

    return out[:B, :OUT_FEATURES]


def init_params(key):
    """Deterministic synthetic parameters (shapes match the PyTorch module)."""
    ks = jax.random.split(key, 6)

    def linear(kw, kb, fan_in, fan_out):
        bound = 1.0 / math.sqrt(fan_in)
        w = jax.random.uniform(kw, (fan_in, fan_out), jnp.float32, -bound, bound)
        b = jax.random.uniform(kb, (1, fan_out), jnp.float32, -bound, bound)
        return w, b

    w1, b1 = linear(ks[0], ks[1], IN_FEATURES, MIDDLE_SIZE)
    w2, b2 = linear(ks[2], ks[3], MIDDLE_SIZE, FC2_OUT)
    w3, b3 = linear(ks[4], ks[5], FC2_OUT, OUT_FEATURES)
    gamma = jnp.ones((1, FC2_OUT), jnp.float32)   # LayerNorm weight init
    beta = jnp.zeros((1, FC2_OUT), jnp.float32)   # LayerNorm bias init
    return (w1, b1, w2, b2, gamma, beta, w3, b3)


def reference_forward(x, params):
    """Pure-JAX reference replicating the PyTorch forward (f32, erf GELU)."""
    w1, b1, w2, b2, gamma, beta, w3, b3 = params
    h1 = x @ w1 + b1
    baseline = jnp.mean(h1.reshape(x.shape[0], POOL_OUT, POOL_WIN), axis=-1)
    h2 = h1 @ w2 + b2
    mu = jnp.mean(h2, axis=-1, keepdims=True)
    var = jnp.mean(jnp.square(h2 - mu), axis=-1, keepdims=True)
    h2n = (h2 - mu) * jax.lax.rsqrt(var + 1e-5) * gamma + beta
    g = 0.5 * h2n * (1.0 + jax.lax.erf(h2n / math.sqrt(2.0)))
    return g @ w3 + b3 + baseline


if __name__ == "__main__":
    key = jax.random.PRNGKey(0)
    kx, kp = jax.random.split(key)

    params = init_params(kp)

    # --- small-shape correctness check (f32 path, tight tolerance) ---
    B = 8
    x = jax.random.normal(kx, (B, IN_FEATURES), jnp.float32)
    ref = reference_forward(x, params)

    out = jax.block_until_ready(projection_forward(x, params))
    assert out.shape == (B, OUT_FEATURES)
    assert jnp.allclose(out, ref, atol=1e-4, rtol=1e-4), "f32 mismatch vs reference"

    # --- exercise batch padding + multi-step grid (tb smaller than padded B) ---
    B2 = 40
    x2 = jax.random.normal(jax.random.fold_in(kx, 1), (B2, IN_FEATURES), jnp.float32)
    ref2 = reference_forward(x2, params)
    out2 = jax.block_until_ready(projection_forward(x2, params, tb=16))
    assert out2.shape == (B2, OUT_FEATURES)
    assert jnp.allclose(out2, ref2, atol=1e-4, rtol=1e-4), "tiled-grid mismatch vs reference"

    # --- bf16 matmul fast path (v6e/v7x), f32 accumulation; loose tolerance ---
    out_bf16 = jax.block_until_ready(
        projection_forward(x, params, compute_dtype=jnp.bfloat16))
    assert out_bf16.shape == (B, OUT_FEATURES)
    assert jnp.allclose(out_bf16, ref, atol=5e-2, rtol=5e-2), "bf16 mismatch vs reference"

    print("KERNEL_OK")
</pallas_src>

<mosaic_0001>
module attributes {stable_mosaic.version = 11 : i64} {
  func.func @projection_kernel(%arg0: i32, %arg1: memref<8x768xf32, #tpu.memory_space<vmem>>, %arg2: memref<768x512xf32, #tpu.memory_space<vmem>>, %arg3: memref<1x512xf32, #tpu.memory_space<vmem>>, %arg4: memref<768x128xf32, #tpu.memory_space<vmem>>, %arg5: memref<1x128xf32, #tpu.memory_space<vmem>>, %arg6: memref<512x256xf32, #tpu.memory_space<vmem>>, %arg7: memref<1x256xf32, #tpu.memory_space<vmem>>, %arg8: memref<1x256xf32, #tpu.memory_space<vmem>>, %arg9: memref<1x256xf32, #tpu.memory_space<vmem>>, %arg10: memref<256x128xf32, #tpu.memory_space<vmem>>, %arg11: memref<1x128xf32, #tpu.memory_space<vmem>>, %arg12: memref<8x128xf32, #tpu.memory_space<vmem>>) attributes {dimension_semantics = [#tpu.dimension_semantics<parallel>], iteration_bounds = array<i64: 1>, scalar_prefetch = 0 : i64, scratch_operands = 0 : i64, tpu.core_type = #tpu.core_type<tc>, window_params = [{transform_indices = @transform_0, window_bounds = array<i64: 8, 768>}, {pipeline_mode = #tpu.pipeline_mode<synchronous>, transform_indices = @transform_1, window_bounds = array<i64: 768, 512>}, {pipeline_mode = #tpu.pipeline_mode<synchronous>, transform_indices = @transform_2, window_bounds = array<i64: 1, 512>}, {pipeline_mode = #tpu.pipeline_mode<synchronous>, transform_indices = @transform_3, window_bounds = array<i64: 768, 128>}, {pipeline_mode = #tpu.pipeline_mode<synchronous>, transform_indices = @transform_4, window_bounds = array<i64: 1, 128>}, {pipeline_mode = #tpu.pipeline_mode<synchronous>, transform_indices = @transform_5, window_bounds = array<i64: 512, 256>}, {pipeline_mode = #tpu.pipeline_mode<synchronous>, transform_indices = @transform_6, window_bounds = array<i64: 1, 256>}, {pipeline_mode = #tpu.pipeline_mode<synchronous>, transform_indices = @transform_7, window_bounds = array<i64: 1, 256>}, {pipeline_mode = #tpu.pipeline_mode<synchronous>, transform_indices = @transform_8, window_bounds = array<i64: 1, 256>}, {pipeline_mode = #tpu.pipeline_mode<synchronous>, transform_indices = @transform_9, window_bounds = array<i64: 256, 128>}, {pipeline_mode = #tpu.pipeline_mode<synchronous>, transform_indices = @transform_10, window_bounds = array<i64: 1, 128>}, {transform_indices = @transform_11, window_bounds = array<i64: 8, 128>}]} {
    %c0 = arith.constant 0 : index
    %c0_0 = arith.constant 0 : index
    %0 = vector.load %arg1[%c0, %c0_0] : memref<8x768xf32, #tpu.memory_space<vmem>>, vector<8x768xf32>
    %c0_1 = arith.constant 0 : index
    %c0_2 = arith.constant 0 : index
    %1 = vector.load %arg4[%c0_1, %c0_2] : memref<768x128xf32, #tpu.memory_space<vmem>>, vector<768x128xf32>
    %cst = arith.constant dense<0.000000e+00> : vector<8x128xf32>
    %2 = tpu.matmul %0, %1, %cst {dimension_numbers = #tpu.dot_dimension_numbers<[1], [0], [0], [1], [0, 0, 1, 1], [], []>} : vector<8x768xf32>, vector<768x128xf32>, vector<8x128xf32> -> vector<8x128xf32>
    %c0_3 = arith.constant 0 : index
    %c0_4 = arith.constant 0 : index
    %3 = vector.load %arg5[%c0_3, %c0_4] : memref<1x128xf32, #tpu.memory_space<vmem>>, vector<1x128xf32>
    %4 = vector.broadcast %3 : vector<1x128xf32> to vector<8x128xf32>
    %5 = arith.addf %2, %4 : vector<8x128xf32>
    %c0_5 = arith.constant 0 : index
    %c0_6 = arith.constant 0 : index
    %6 = vector.load %arg2[%c0_5, %c0_6] : memref<768x512xf32, #tpu.memory_space<vmem>>, vector<768x512xf32>
    %cst_7 = arith.constant dense<0.000000e+00> : vector<8x512xf32>
    %7 = tpu.matmul %0, %6, %cst_7 {dimension_numbers = #tpu.dot_dimension_numbers<[1], [0], [0], [1], [0, 0, 1, 1], [], []>} : vector<8x768xf32>, vector<768x512xf32>, vector<8x512xf32> -> vector<8x512xf32>
    %c0_8 = arith.constant 0 : index
    %c0_9 = arith.constant 0 : index
    %8 = vector.load %arg3[%c0_8, %c0_9] : memref<1x512xf32, #tpu.memory_space<vmem>>, vector<1x512xf32>
    %9 = vector.broadcast %8 : vector<1x512xf32> to vector<8x512xf32>
    %10 = arith.addf %7, %9 : vector<8x512xf32>
    %c0_10 = arith.constant 0 : index
    %c0_11 = arith.constant 0 : index
    %11 = vector.load %arg6[%c0_10, %c0_11] : memref<512x256xf32, #tpu.memory_space<vmem>>, vector<512x256xf32>
    %cst_12 = arith.constant dense<0.000000e+00> : vector<8x256xf32>
    %12 = tpu.matmul %10, %11, %cst_12 {dimension_numbers = #tpu.dot_dimension_numbers<[1], [0], [0], [1], [0, 0, 1, 1], [], []>} : vector<8x512xf32>, vector<512x256xf32>, vector<8x256xf32> -> vector<8x256xf32>
    %c0_13 = arith.constant 0 : index
    %c0_14 = arith.constant 0 : index
    %13 = vector.load %arg7[%c0_13, %c0_14] : memref<1x256xf32, #tpu.memory_space<vmem>>, vector<1x256xf32>
    %14 = vector.broadcast %13 : vector<1x256xf32> to vector<8x256xf32>
    %15 = arith.addf %12, %14 : vector<8x256xf32>
    %cst_15 = arith.constant dense<0.000000e+00> : vector<8xf32>
    %16 = vector.multi_reduction <add>, %15, %cst_15 [1] : vector<8x256xf32> to vector<8xf32>
    %17 = vector.shape_cast %16 : vector<8xf32> to vector<8x1xf32>
    %cst_16 = arith.constant 2.560000e+02 : f32
    %18 = vector.broadcast %cst_16 : f32 to vector<8x1xf32>
    %19 = arith.divf %17, %18 : vector<8x1xf32>
    %20 = vector.broadcast %19 : vector<8x1xf32> to vector<8x256xf32>
    %21 = arith.subf %15, %20 : vector<8x256xf32>
    %22 = arith.mulf %21, %21 : vector<8x256xf32>
    %cst_17 = arith.constant dense<0.000000e+00> : vector<8xf32>
    %23 = vector.multi_reduction <add>, %22, %cst_17 [1] : vector<8x256xf32> to vector<8xf32>
    %24 = vector.shape_cast %23 : vector<8xf32> to vector<8x1xf32>
    %cst_18 = arith.constant 2.560000e+02 : f32
    %25 = vector.broadcast %cst_18 : f32 to vector<8x1xf32>
    %26 = arith.divf %24, %25 : vector<8x1xf32>
    %27 = vector.broadcast %19 : vector<8x1xf32> to vector<8x256xf32>
    %28 = arith.subf %15, %27 : vector<8x256xf32>
    %cst_19 = arith.constant 9.99999974E-6 : f32
    %29 = vector.broadcast %cst_19 : f32 to vector<8x1xf32>
    %30 = arith.addf %26, %29 : vector<8x1xf32>
    %31 = math.rsqrt %30 : vector<8x1xf32>
    %32 = vector.broadcast %31 : vector<8x1xf32> to vector<8x256xf32>
    %33 = arith.mulf %28, %32 : vector<8x256xf32>
    %c0_20 = arith.constant 0 : index
    %c0_21 = arith.constant 0 : index
    %34 = vector.load %arg8[%c0_20, %c0_21] : memref<1x256xf32, #tpu.memory_space<vmem>>, vector<1x256xf32>
    %35 = vector.broadcast %34 : vector<1x256xf32> to vector<8x256xf32>
    %36 = arith.mulf %33, %35 : vector<8x256xf32>
    %c0_22 = arith.constant 0 : index
    %c0_23 = arith.constant 0 : index
    %37 = vector.load %arg9[%c0_22, %c0_23] : memref<1x256xf32, #tpu.memory_space<vmem>>, vector<1x256xf32>
    %38 = vector.broadcast %37 : vector<1x256xf32> to vector<8x256xf32>
    %39 = arith.addf %36, %38 : vector<8x256xf32>
    %cst_24 = arith.constant 5.000000e-01 : f32
    %40 = vector.broadcast %cst_24 : f32 to vector<8x256xf32>
    %41 = arith.mulf %40, %39 : vector<8x256xf32>
    %cst_25 = arith.constant 0.707106769 : f32
    %42 = vector.broadcast %cst_25 : f32 to vector<8x256xf32>
    %43 = arith.mulf %39, %42 : vector<8x256xf32>
    %44 = math.erf %43 : vector<8x256xf32>
    %cst_26 = arith.constant 1.000000e+00 : f32
    %45 = vector.broadcast %cst_26 : f32 to vector<8x256xf32>
    %46 = arith.addf %45, %44 : vector<8x256xf32>
    %47 = arith.mulf %41, %46 : vector<8x256xf32>
    %c0_27 = arith.constant 0 : index
    %c0_28 = arith.constant 0 : index
    %48 = vector.load %arg10[%c0_27, %c0_28] : memref<256x128xf32, #tpu.memory_space<vmem>>, vector<256x128xf32>
    %cst_29 = arith.constant dense<0.000000e+00> : vector<8x128xf32>
    %49 = tpu.matmul %47, %48, %cst_29 {dimension_numbers = #tpu.dot_dimension_numbers<[1], [0], [0], [1], [0, 0, 1, 1], [], []>} : vector<8x256xf32>, vector<256x128xf32>, vector<8x128xf32> -> vector<8x128xf32>
    %c0_30 = arith.constant 0 : index
    %c0_31 = arith.constant 0 : index
    %50 = vector.load %arg11[%c0_30, %c0_31] : memref<1x128xf32, #tpu.memory_space<vmem>>, vector<1x128xf32>
    %51 = vector.broadcast %50 : vector<1x128xf32> to vector<8x128xf32>
    %52 = arith.addf %49, %51 : vector<8x128xf32>
    %53 = arith.addf %52, %5 : vector<8x128xf32>
    %c0_32 = arith.constant 0 : index
    %c0_33 = arith.constant 0 : index
    %54 = vector.load %arg12[%c0_32, %c0_33] : memref<8x128xf32, #tpu.memory_space<vmem>>, vector<8x128xf32>
    tpu.vector_store %arg12[%c0_32, %c0_33], %53 {strides = array<i32>} : memref<8x128xf32, #tpu.memory_space<vmem>>, vector<8x128xf32>,
    return
  }
  func.func @transform_0(%arg0: i32) -> (i32, i32) {
    %c0_i32 = arith.constant 0 : i32
    %c0_i32_0 = arith.constant 0 : i32
    return %arg0, %c0_i32 : i32, i32
  }
  func.func @transform_1(%arg0: i32) -> (i32, i32) {
    %c0_i32 = arith.constant 0 : i32
    %c0_i32_0 = arith.constant 0 : i32
    %c0_i32_1 = arith.constant 0 : i32
    return %c0_i32, %c0_i32_0 : i32, i32
  }
  func.func @transform_2(%arg0: i32) -> (i32, i32) {
    %c0_i32 = arith.constant 0 : i32
    %c0_i32_0 = arith.constant 0 : i32
    %c0_i32_1 = arith.constant 0 : i32
    return %c0_i32, %c0_i32_0 : i32, i32
  }
  func.func @transform_3(%arg0: i32) -> (i32, i32) {
    %c0_i32 = arith.constant 0 : i32
    %c0_i32_0 = arith.constant 0 : i32
    %c0_i32_1 = arith.constant 0 : i32
    return %c0_i32, %c0_i32_0 : i32, i32
  }
  func.func @transform_4(%arg0: i32) -> (i32, i32) {
    %c0_i32 = arith.constant 0 : i32
    %c0_i32_0 = arith.constant 0 : i32
    %c0_i32_1 = arith.constant 0 : i32
    return %c0_i32, %c0_i32_0 : i32, i32
  }
  func.func @transform_5(%arg0: i32) -> (i32, i32) {
    %c0_i32 = arith.constant 0 : i32
    %c0_i32_0 = arith.constant 0 : i32
    %c0_i32_1 = arith.constant 0 : i32
    return %c0_i32, %c0_i32_0 : i32, i32
  }
  func.func @transform_6(%arg0: i32) -> (i32, i32) {
    %c0_i32 = arith.constant 0 : i32
    %c0_i32_0 = arith.constant 0 : i32
    %c0_i32_1 = arith.constant 0 : i32
    return %c0_i32, %c0_i32_0 : i32, i32
  }
  func.func @transform_7(%arg0: i32) -> (i32, i32) {
    %c0_i32 = arith.constant 0 : i32
    %c0_i32_0 = arith.constant 0 : i32
    %c0_i32_1 = arith.constant 0 : i32
    return %c0_i32, %c0_i32_0 : i32, i32
  }
  func.func @transform_8(%arg0: i32) -> (i32, i32) {
    %c0_i32 = arith.constant 0 : i32
    %c0_i32_0 = arith.constant 0 : i32
    %c0_i32_1 = arith.constant 0 : i32
    return %c0_i32, %c0_i32_0 : i32, i32
  }
  func.func @transform_9(%arg0: i32) -> (i32, i32) {
    %c0_i32 = arith.constant 0 : i32
    %c0_i32_0 = arith.constant 0 : i32
    %c0_i32_1 = arith.constant 0 : i32
    return %c0_i32, %c0_i32_0 : i32, i32
  }
  func.func @transform_10(%arg0: i32) -> (i32, i32) {
    %c0_i32 = arith.constant 0 : i32
    %c0_i32_0 = arith.constant 0 : i32
    %c0_i32_1 = arith.constant 0 : i32
    return %c0_i32, %c0_i32_0 : i32, i32
  }
  func.func @transform_11(%arg0: i32) -> (i32, i32) {
    %c0_i32 = arith.constant 0 : i32
    %c0_i32_0 = arith.constant 0 : i32
    return %arg0, %c0_i32 : i32, i32
  }
}

</mosaic_0001>

<llo_original>
// kernel: projection_forward.1
$region0: #{projection_forward.1}
  #allocation0 [shape = 'u32[]', space=smem, size = 0x4, offset = 0x4, fixed_abs, tag = 'smem constant byte address 0x4 - core index']
  #allocation1 [shape = 'u32[144,128]{1,0:T(1,128)}', space=vmem, size = 0x12000, scoped, tag = 'internal scratch']
  %s0 = inlined_call_operand.vmem [shape: f32[8,768], index: 0, kind: input, shape index: {}]
  %s1 = inlined_call_operand.vmem [shape: f32[768,512], index: 1, kind: input, shape index: {}]
  %s2 = inlined_call_operand.vmem [shape: f32[1,512], index: 2, kind: input, shape index: {}]
  %s3 = inlined_call_operand.vmem [shape: f32[768,128], index: 3, kind: input, shape index: {}]
  %s4 = inlined_call_operand.vmem [shape: f32[1,128], index: 4, kind: input, shape index: {}]
  %s5 = inlined_call_operand.vmem [shape: f32[512,256], index: 5, kind: input, shape index: {}]
  %s6 = inlined_call_operand.vmem [shape: f32[1,256], index: 6, kind: input, shape index: {}]
  %s7 = inlined_call_operand.vmem [shape: f32[1,256], index: 7, kind: input, shape index: {}]
  %s8 = inlined_call_operand.vmem [shape: f32[1,256], index: 8, kind: input, shape index: {}]
  %s9 = inlined_call_operand.vmem [shape: f32[256,128], index: 9, kind: input, shape index: {}]
  %s10 = inlined_call_operand.vmem [shape: f32[1,128], index: 10, kind: input, shape index: {}]
  %s11 = inlined_call_operand.hbm [shape: f32[8,128], index: 11, kind: output, shape index: {}]
  %s12 = sld [smem:[#allocation0]]
  $region54: #{projection_forward.1} parent=0
    _
  %s14 = ssub.s32 1, %s12
  %s15 = scalar_select 0, %s14, %s12
  $region1: #{projection_forward.1} parent=0
    #allocation2 [shape = 'u8[4096]{0}', space=vmem, size = 0x1000, scoped, tag = 'output window, operand 0, single buffered']
    #allocation3 [shape = 's32[1]{0}', space=sflag, size = 0x4, scoped, tag = 'scoped memory for projection_forward.1']
    %16 = vsyncpa [#allocation3], 0
    // Predicated region
    $region2: #{projection_forward.1} parent=1 // pred_check
      _
    $region3: #{projection_forward.1} parent=1 // pred_check_branch
      %18 = sbr.rel (0) target = $region5
    $region4: #{projection_forward.1} parent=1 // pred_region
      _
    $region5: #{projection_forward.1} parent=1 // pred_fallthru
      _
    // Predicated region
    $region6: #{projection_forward.1} parent=1 // pred_check
      _
    $region7: #{projection_forward.1} parent=1 // pred_check_branch
      %20 = sbr.rel (0) target = $region9
    $region8: #{projection_forward.1} parent=1 // pred_region
      _
    $region9: #{projection_forward.1} parent=1 // pred_fallthru
      _
    // Predicated region
    $region10: #{projection_forward.1} parent=1 // pred_check
      _
    $region11: #{projection_forward.1} parent=1 // pred_check_branch
      %22 = sbr.rel (0) target = $region13
    $region12: #{projection_forward.1} parent=1 // pred_region
      _
    $region13: #{projection_forward.1} parent=1 // pred_fallthru
      _
    // Predicated region
    $region14: #{projection_forward.1} parent=1 // pred_check
      _
    $region15: #{projection_forward.1} parent=1 // pred_check_branch
      %24 = sbr.rel (0) target = $region17
    $region16: #{projection_forward.1} parent=1 // pred_region
      _
    $region17: #{projection_forward.1} parent=1 // pred_fallthru
      _
    // Predicated region
    $region18: #{projection_forward.1} parent=1 // pred_check
      _
    $region19: #{projection_forward.1} parent=1 // pred_check_branch
      %26 = sbr.rel (0) target = $region21
    $region20: #{projection_forward.1} parent=1 // pred_region
      _
    $region21: #{projection_forward.1} parent=1 // pred_fallthru
      _
    // Predicated region
    $region22: #{projection_forward.1} parent=1 // pred_check
      _
    $region23: #{projection_forward.1} parent=1 // pred_check_branch
      %28 = sbr.rel (0) target = $region25
    $region24: #{projection_forward.1} parent=1 // pred_region
      _
    $region25: #{projection_forward.1} parent=1 // pred_fallthru
      _
    // Predicated region
    $region26: #{projection_forward.1} parent=1 // pred_check
      _
    $region27: #{projection_forward.1} parent=1 // pred_check_branch
      %30 = sbr.rel (0) target = $region29
    $region28: #{projection_forward.1} parent=1 // pred_region
      _
    $region29: #{projection_forward.1} parent=1 // pred_fallthru
      _
    // Predicated region
    $region30: #{projection_forward.1} parent=1 // pred_check
      _
    $region31: #{projection_forward.1} parent=1 // pred_check_branch
      %32 = sbr.rel (0) target = $region33
    $region32: #{projection_forward.1} parent=1 // pred_region
      _
    $region33: #{projection_forward.1} parent=1 // pred_fallthru
      _
    // Predicated region
    $region34: #{projection_forward.1} parent=1 // pred_check
      _
    $region35: #{projection_forward.1} parent=1 // pred_check_branch
      %34 = sbr.rel (0) target = $region37
    $region36: #{projection_forward.1} parent=1 // pred_region
      _
    $region37: #{projection_forward.1} parent=1 // pred_fallthru
      _
    // Predicated region
    $region38: #{projection_forward.1} parent=1 // pred_check
      _
    $region39: #{projection_forward.1} parent=1 // pred_check_branch
      %36 = sbr.rel (0) target = $region41
    $region40: #{projection_forward.1} parent=1 // pred_region
      _
    $region41: #{projection_forward.1} parent=1 // pred_fallthru
      _
    // Predicated region
    $region42: #{projection_forward.1} parent=1 // pred_check
      _
    $region43: #{projection_forward.1} parent=1 // pred_check_branch
      %38 = sbr.rel (0) target = $region45
    $region44: #{projection_forward.1} parent=1 // pred_region
      _
    $region45: #{projection_forward.1} parent=1 // pred_fallthru
      _
    %v39 = vld [vmem:[%s0] sm:$0xff]
    %v40 = vld [vmem:[%s0 + $0x8] sm:$0xff]
    %v41 = vld [vmem:[%s0 + $0x10] sm:$0xff]
    %v42 = vld [vmem:[%s0 + $0x18] sm:$0xff]
    %v43 = vld [vmem:[%s0 + $0x20] sm:$0xff]
    %v44 = vld [vmem:[%s0 + $0x28] sm:$0xff]
    %v45 = vld [vmem:[%s3] sm:$0xff]
    %v46 = vld [vmem:[%s3 + $0x8] sm:$0xff]
    %v47 = vld [vmem:[%s3 + $0x10] sm:$0xff]
    %v48 = vld [vmem:[%s3 + $0x18] sm:$0xff]
    %v49 = vld [vmem:[%s3 + $0x20] sm:$0xff]
    %v50 = vld [vmem:[%s3 + $0x28] sm:$0xff]
    %v51 = vld [vmem:[%s3 + $0x30] sm:$0xff]
    %v52 = vld [vmem:[%s3 + $0x38] sm:$0xff]
    %v53 = vld [vmem:[%s3 + $0x40] sm:$0xff]
    %v54 = vld [vmem:[%s3 + $0x48] sm:$0xff]
    %v55 = vld [vmem:[%s3 + $0x50] sm:$0xff]
    %v56 = vld [vmem:[%s3 + $0x58] sm:$0xff]
    %v57 = vld [vmem:[%s3 + $0x60] sm:$0xff]
    %v58 = vld [vmem:[%s3 + $0x68] sm:$0xff]
    %v59 = vld [vmem:[%s3 + $0x70] sm:$0xff]
    %v60 = vld [vmem:[%s3 + $0x78] sm:$0xff]
    %v61 = vld [vmem:[%s3 + $0x80] sm:$0xff]
    %v62 = vld [vmem:[%s3 + $0x88] sm:$0xff]
    %v63 = vld [vmem:[%s3 + $0x90] sm:$0xff]
    %v64 = vld [vmem:[%s3 + $0x98] sm:$0xff]
    %v65 = vld [vmem:[%s3 + $0xa0] sm:$0xff]
    %v66 = vld [vmem:[%s3 + $0xa8] sm:$0xff]
    %v67 = vld [vmem:[%s3 + $0xb0] sm:$0xff]
    %v68 = vld [vmem:[%s3 + $0xb8] sm:$0xff]
    %v69 = vld [vmem:[%s3 + $0xc0] sm:$0xff]
    %v70 = vld [vmem:[%s3 + $0xc8] sm:$0xff]
    %v71 = vld [vmem:[%s3 + $0xd0] sm:$0xff]
    %v72 = vld [vmem:[%s3 + $0xd8] sm:$0xff]
    %v73 = vld [vmem:[%s3 + $0xe0] sm:$0xff]
    %v74 = vld [vmem:[%s3 + $0xe8] sm:$0xff]
    %v75 = vld [vmem:[%s3 + $0xf0] sm:$0xff]
    %v76 = vld [vmem:[%s3 + $0xf8] sm:$0xff]
    %v77 = vld [vmem:[%s3 + $0x100] sm:$0xff]
    %v78 = vld [vmem:[%s3 + $0x108] sm:$0xff]
    %v79 = vld [vmem:[%s3 + $0x110] sm:$0xff]
    %v80 = vld [vmem:[%s3 + $0x118] sm:$0xff]
    %v81 = vld [vmem:[%s3 + $0x120] sm:$0xff]
    %v82 = vld [vmem:[%s3 + $0x128] sm:$0xff]
    %v83 = vld [vmem:[%s3 + $0x130] sm:$0xff]
    %v84 = vld [vmem:[%s3 + $0x138] sm:$0xff]
    %v85 = vld [vmem:[%s3 + $0x140] sm:$0xff]
    %v86 = vld [vmem:[%s3 + $0x148] sm:$0xff]
    %v87 = vld [vmem:[%s3 + $0x150] sm:$0xff]
    %v88 = vld [vmem:[%s3 + $0x158] sm:$0xff]
    %v89 = vld [vmem:[%s3 + $0x160] sm:$0xff]
    %v90 = vld [vmem:[%s3 + $0x168] sm:$0xff]
    %v91 = vld [vmem:[%s3 + $0x170] sm:$0xff]
    %v92 = vld [vmem:[%s3 + $0x178] sm:$0xff]
    %v93 = vld [vmem:[%s3 + $0x180] sm:$0xff]
    %v94 = vld [vmem:[%s3 + $0x188] sm:$0xff]
    %v95 = vld [vmem:[%s3 + $0x190] sm:$0xff]
    %v96 = vld [vmem:[%s3 + $0x198] sm:$0xff]
    %v97 = vld [vmem:[%s3 + $0x1a0] sm:$0xff]
    %v98 = vld [vmem:[%s3 + $0x1a8] sm:$0xff]
    %v99 = vld [vmem:[%s3 + $0x1b0] sm:$0xff]
    %v100 = vld [vmem:[%s3 + $0x1b8] sm:$0xff]
    %v101 = vld [vmem:[%s3 + $0x1c0] sm:$0xff]
    %v102 = vld [vmem:[%s3 + $0x1c8] sm:$0xff]
    %v103 = vld [vmem:[%s3 + $0x1d0] sm:$0xff]
    %v104 = vld [vmem:[%s3 + $0x1d8] sm:$0xff]
    %v105 = vld [vmem:[%s3 + $0x1e0] sm:$0xff]
    %v106 = vld [vmem:[%s3 + $0x1e8] sm:$0xff]
    %v107 = vld [vmem:[%s3 + $0x1f0] sm:$0xff]
    %v108 = vld [vmem:[%s3 + $0x1f8] sm:$0xff]
    %v109 = vld [vmem:[%s3 + $0x200] sm:$0xff]
    %v110 = vld [vmem:[%s3 + $0x208] sm:$0xff]
    %v111 = vld [vmem:[%s3 + $0x210] sm:$0xff]
    %v112 = vld [vmem:[%s3 + $0x218] sm:$0xff]
    %v113 = vld [vmem:[%s3 + $0x220] sm:$0xff]
    %v114 = vld [vmem:[%s3 + $0x228] sm:$0xff]
    %v115 = vld [vmem:[%s3 + $0x230] sm:$0xff]
    %v116 = vld [vmem:[%s3 + $0x238] sm:$0xff]
    %v117 = vld [vmem:[%s3 + $0x240] sm:$0xff]
    %v118 = vld [vmem:[%s3 + $0x248] sm:$0xff]
    %v119 = vld [vmem:[%s3 + $0x250] sm:$0xff]
    %v120 = vld [vmem:[%s3 + $0x258] sm:$0xff]
    %v121 = vld [vmem:[%s3 + $0x260] sm:$0xff]
    %v122 = vld [vmem:[%s3 + $0x268] sm:$0xff]
    %v123 = vld [vmem:[%s3 + $0x270] sm:$0xff]
    %v124 = vld [vmem:[%s3 + $0x278] sm:$0xff]
    %v125 = vld [vmem:[%s3 + $0x280] sm:$0xff]
    %v126 = vld [vmem:[%s3 + $0x288] sm:$0xff]
    %v127 = vld [vmem:[%s3 + $0x290] sm:$0xff]
    %v128 = vld [vmem:[%s3 + $0x298] sm:$0xff]
    %v129 = vld [vmem:[%s3 + $0x2a0] sm:$0xff]
    %v130 = vld [vmem:[%s3 + $0x2a8] sm:$0xff]
    %v131 = vld [vmem:[%s3 + $0x2b0] sm:$0xff]
    %v132 = vld [vmem:[%s3 + $0x2b8] sm:$0xff]
    %v133 = vld [vmem:[%s3 + $0x2c0] sm:$0xff]
    %v134 = vld [vmem:[%s3 + $0x2c8] sm:$0xff]
    %v135 = vld [vmem:[%s3 + $0x2d0] sm:$0xff]
    %v136 = vld [vmem:[%s3 + $0x2d8] sm:$0xff]
    %v137 = vld [vmem:[%s3 + $0x2e0] sm:$0xff]
    %v138 = vld [vmem:[%s3 + $0x2e8] sm:$0xff]
    %v139 = vld [vmem:[%s3 + $0x2f0] sm:$0xff]
    %v140 = vld [vmem:[%s3 + $0x2f8] sm:$0xff]
    %v141 = vld [vmem:[%s4] sm:$0x1]
    %v143 = vlaneseq
    %v144 = vshrl.u32 %v143, 7
    %v145 = vsub.s32 0, %v144
    %v146 = vrot.slane %v141, %v145
    %148 = vmatprep.subr.mxu0 0.0
    %149 = vmatpush1.msra.mxu0 %v45
    %150 = vmatprep.subr.mxu0 0.0
    %151 = vmatpush1.msra.mxu0 %v46
    %152 = vmatprep.subr.mxu0 0.0
    %153 = vmatpush1.msra.mxu0 %v47
    %154 = vmatprep.subr.mxu0 0.0
    %155 = vmatpush1.msra.mxu0 %v48
    %156 = vmatprep.subr.mxu0 0.0
    %157 = vmatpush1.msra.mxu0 %v49
    %158 = vmatprep.subr.mxu0 0.0
    %159 = vmatpush1.msra.mxu0 %v50
    %160 = vmatprep.subr.mxu0 0.0
    %161 = vmatpush1.msra.mxu0 %v51
    %162 = vmatprep.subr.mxu0 0.0
    %163 = vmatpush1.msra.mxu0 %v52
    %164 = vmatprep.subr.mxu0 0.0
    %165 = vmatpush1.msra.mxu0 %v53
    %166 = vmatprep.subr.mxu0 0.0
    %167 = vmatpush1.msra.mxu0 %v54
    %168 = vmatprep.subr.mxu0 0.0
    %169 = vmatpush1.msra.mxu0 %v55
    %170 = vmatprep.subr.mxu0 0.0
    %171 = vmatpush1.msra.mxu0 %v56
    %172 = vmatprep.subr.mxu0 0.0
    %173 = vmatpush1.msra.mxu0 %v57
    %174 = vmatprep.subr.mxu0 0.0
    %175 = vmatpush1.msra.mxu0 %v58
    %176 = vmatprep.subr.mxu0 0.0
    %177 = vmatpush1.msra.mxu0 %v59
    %178 = vmatprep.subr.mxu0 0.0
    %179 = vmatpush1.msra.mxu0 %v60
    %180 = vmatprep.subr.mxu0 0.0
    %181 = vmatpush1.msra.mxu0 %v61
    %182 = vmatprep.subr.mxu0 0.0
    %183 = vmatpush1.msra.mxu0 %v62
    %184 = vmatprep.subr.mxu0 0.0
    %185 = vmatpush1.msra.mxu0 %v63
    %186 = vmatprep.subr.mxu0 0.0
    %187 = vmatpush1.msra.mxu0 %v64
    %188 = vmatprep.subr.mxu0 0.0
    %189 = vmatpush1.msra.mxu0 %v65
    %190 = vmatprep.subr.mxu0 0.0
    %191 = vmatpush1.msra.mxu0 %v66
    %192 = vmatprep.subr.mxu0 0.0
    %193 = vmatpush1.msra.mxu0 %v67
    %194 = vmatprep.subr.mxu0 0.0
    %195 = vmatpush1.msra.mxu0 %v68
    %196 = vmatprep.subr.mxu0 0.0
    %197 = vmatpush1.msra.mxu0 %v69
    %198 = vmatprep.subr.mxu0 0.0
    %199 = vmatpush1.msra.mxu0 %v70
    %200 = vmatprep.subr.mxu0 0.0
    %201 = vmatpush1.msra.mxu0 %v71
    %202 = vmatprep.subr.mxu0 0.0
    %203 = vmatpush1.msra.mxu0 %v72
    %204 = vmatprep.subr.mxu0 0.0
    %205 = vmatpush1.msra.mxu0 %v73
    %206 = vmatprep.subr.mxu0 0.0
    %207 = vmatpush1.msra.mxu0 %v74
    %208 = vmatprep.subr.mxu0 0.0
    %209 = vmatpush1.msra.mxu0 %v75
    %210 = vmatprep.subr.mxu0 0.0
    %211 = vmatpush1.msra.mxu0 %v76
    %212 = vmatprep.mubr.f32.mxu0 %v40
    %213 = vmatmul.mubr.f32.gmra.mrb[0].mxu0 %v39
    %v214 = vpop.f32.mrb[0].mxu0
    %v215 = vadd.f32 %v146, %v214
    %v216 = vpop.f32.mrb[0].mxu0
    %217 = vdwg.mxu0
    %218 = vmatprep.subr.mxu0 0.0
    %219 = vmatpush1.msra.mxu0 %v77
    %220 = vmatprep.subr.mxu0 0.0
    %221 = vmatpush1.msra.mxu0 %v78
    %222 = vmatprep.subr.mxu0 0.0
    %223 = vmatpush1.msra.mxu0 %v79
    %224 = vmatprep.subr.mxu0 0.0
    %225 = vmatpush1.msra.mxu0 %v80
    %226 = vmatprep.subr.mxu0 0.0
    %227 = vmatpush1.msra.mxu0 %v81
    %228 = vmatprep.subr.mxu0 0.0
    %229 = vmatpush1.msra.mxu0 %v82
    %230 = vmatprep.subr.mxu0 0.0
    %231 = vmatpush1.msra.mxu0 %v83
    %232 = vmatprep.subr.mxu0 0.0
    %233 = vmatpush1.msra.mxu0 %v84
    %234 = vmatprep.subr.mxu0 0.0
    %235 = vmatpush1.msra.mxu0 %v85
    %236 = vmatprep.subr.mxu0 0.0
    %237 = vmatpush1.msra.mxu0 %v86
    %238 = vmatprep.subr.mxu0 0.0
    %239 = vmatpush1.msra.mxu0 %v87
    %240 = vmatprep.subr.mxu0 0.0
    %241 = vmatpush1.msra.mxu0 %v88
    %242 = vmatprep.subr.mxu0 0.0
    %243 = vmatpush1.msra.mxu0 %v89
    %244 = vmatprep.subr.mxu0 0.0
    %245 = vmatpush1.msra.mxu0 %v90
    %246 = vmatprep.subr.mxu0 0.0
    %247 = vmatpush1.msra.mxu0 %v91
    %248 = vmatprep.subr.mxu0 0.0
    %249 = vmatpush1.msra.mxu0 %v92
    %250 = vmatprep.subr.mxu0 0.0
    %251 = vmatpush1.msra.mxu0 %v93
    %252 = vmatprep.subr.mxu0 0.0
    %253 = vmatpush1.msra.mxu0 %v94
    %254 = vmatprep.subr.mxu0 0.0
    %255 = vmatpush1.msra.mxu0 %v95
    %256 = vmatprep.subr.mxu0 0.0
    %257 = vmatpush1.msra.mxu0 %v96
    %258 = vmatprep.subr.mxu0 0.0
    %259 = vmatpush1.msra.mxu0 %v97
    %260 = vmatprep.subr.mxu0 0.0
    %261 = vmatpush1.msra.mxu0 %v98
    %262 = vmatprep.subr.mxu0 0.0
    %263 = vmatpush1.msra.mxu0 %v99
    %264 = vmatprep.subr.mxu0 0.0
    %265 = vmatpush1.msra.mxu0 %v100
    %266 = vmatprep.subr.mxu0 0.0
    %267 = vmatpush1.msra.mxu0 %v101
    %268 = vmatprep.subr.mxu0 0.0
    %269 = vmatpush1.msra.mxu0 %v102
    %270 = vmatprep.subr.mxu0 0.0
    %271 = vmatpush1.msra.mxu0 %v103
    %272 = vmatprep.subr.mxu0 0.0
    %273 = vmatpush1.msra.mxu0 %v104
    %274 = vmatprep.subr.mxu0 0.0
    %275 = vmatpush1.msra.mxu0 %v105
    %276 = vmatprep.subr.mxu0 0.0
    %277 = vmatpush1.msra.mxu0 %v106
    %278 = vmatprep.subr.mxu0 0.0
    %279 = vmatpush1.msra.mxu0 %v107
    %280 = vmatprep.subr.mxu0 0.0
    %281 = vmatpush1.msra.mxu0 %v108
    %282 = vmatprep.mubr.f32.mxu0 %v42
    %283 = vmatmul.mubr.f32.gmra.mrb[0].mxu0 %v41
    %v284 = vpop.f32.mrb[0].mxu0
    %v285 = vadd.f32 %v215, %v284
    %v286 = vpop.f32.mrb[0].mxu0
    %287 = vdwg.mxu0
    %288 = vmatprep.subr.mxu0 0.0
    %289 = vmatpush1.msra.mxu0 %v109
    %290 = vmatprep.subr.mxu0 0.0
    %291 = vmatpush1.msra.mxu0 %v110
    %292 = vmatprep.subr.mxu0 0.0
    %293 = vmatpush1.msra.mxu0 %v111
    %294 = vmatprep.subr.mxu0 0.0
    %295 = vmatpush1.msra.mxu0 %v112
    %296 = vmatprep.subr.mxu0 0.0
    %297 = vmatpush1.msra.mxu0 %v113
    %298 = vmatprep.subr.mxu0 0.0
    %299 = vmatpush1.msra.mxu0 %v114
    %300 = vmatprep.subr.mxu0 0.0
    %301 = vmatpush1.msra.mxu0 %v115
    %302 = vmatprep.subr.mxu0 0.0
    %303 = vmatpush1.msra.mxu0 %v116
    %304 = vmatprep.subr.mxu0 0.0
    %305 = vmatpush1.msra.mxu0 %v117
    %306 = vmatprep.subr.mxu0 0.0
    %307 = vmatpush1.msra.mxu0 %v118
    %308 = vmatprep.subr.mxu0 0.0
    %309 = vmatpush1.msra.mxu0 %v119
    %310 = vmatprep.subr.mxu0 0.0
    %311 = vmatpush1.msra.mxu0 %v120
    %312 = vmatprep.subr.mxu0 0.0
    %313 = vmatpush1.msra.mxu0 %v121
    %314 = vmatprep.subr.mxu0 0.0
    %315 = vmatpush1.msra.mxu0 %v122
    %316 = vmatprep.subr.mxu0 0.0
    %317 = vmatpush1.msra.mxu0 %v123
    %318 = vmatprep.subr.mxu0 0.0
    %319 = vmatpush1.msra.mxu0 %v124
    %320 = vmatprep.subr.mxu0 0.0
    %321 = vmatpush1.msra.mxu0 %v125
    %322 = vmatprep.subr.mxu0 0.0
    %323 = vmatpush1.msra.mxu0 %v126
    %324 = vmatprep.subr.mxu0 0.0
    %325 = vmatpush1.msra.mxu0 %v127
    %326 = vmatprep.subr.mxu0 0.0
    %327 = vmatpush1.msra.mxu0 %v128
    %328 = vmatprep.subr.mxu0 0.0
    %329 = vmatpush1.msra.mxu0 %v129
    %330 = vmatprep.subr.mxu0 0.0
    %331 = vmatpush1.msra.mxu0 %v130
    %332 = vmatprep.subr.mxu0 0.0
    %333 = vmatpush1.msra.mxu0 %v131
    %334 = vmatprep.subr.mxu0 0.0
    %335 = vmatpush1.msra.mxu0 %v132
    %336 = vmatprep.subr.mxu0 0.0
    %337 = vmatpush1.msra.mxu0 %v133
    %338 = vmatprep.subr.mxu0 0.0
    %339 = vmatpush1.msra.mxu0 %v134
    %340 = vmatprep.subr.mxu0 0.0
    %341 = vmatpush1.msra.mxu0 %v135
    %342 = vmatprep.subr.mxu0 0.0
    %343 = vmatpush1.msra.mxu0 %v136
    %344 = vmatprep.subr.mxu0 0.0
    %345 = vmatpush1.msra.mxu0 %v137
    %346 = vmatprep.subr.mxu0 0.0
    %347 = vmatpush1.msra.mxu0 %v138
    %348 = vmatprep.subr.mxu0 0.0
    %349 = vmatpush1.msra.mxu0 %v139
    %350 = vmatprep.subr.mxu0 0.0
    %351 = vmatpush1.msra.mxu0 %v140
    %352 = vmatprep.mubr.f32.mxu0 %v44
    %353 = vmatmul.mubr.f32.gmra.mrb[0].mxu0 %v43
    %v354 = vpop.f32.mrb[0].mxu0
    %v355 = vadd.f32 %v285, %v354
    %v356 = vpop.f32.mrb[0].mxu0
    %357 = vdwg.mxu0
    %v358 = vld [vmem:[%s1] sm:$0xff]
    %v359 = vld [vmem:[%s1 + $0x8] sm:$0xff]
    %v360 = vld [vmem:[%s1 + $0x10] sm:$0xff]
    %v361 = vld [vmem:[%s1 + $0x18] sm:$0xff]
    %v362 = vld [vmem:[%s1 + $0x20] sm:$0xff]
    %v363 = vld [vmem:[%s1 + $0x28] sm:$0xff]
    %v364 = vld [vmem:[%s1 + $0x30] sm:$0xff]
    %v365 = vld [vmem:[%s1 + $0x38] sm:$0xff]
    %v366 = vld [vmem:[%s1 + $0x40] sm:$0xff]
    %v367 = vld [vmem:[%s1 + $0x48] sm:$0xff]
    %v368 = vld [vmem:[%s1 + $0x50] sm:$0xff]
    %v369 = vld [vmem:[%s1 + $0x58] sm:$0xff]
    %v370 = vld [vmem:[%s1 + $0x60] sm:$0xff]
    %v371 = vld [vmem:[%s1 + $0x68] sm:$0xff]
    %v372 = vld [vmem:[%s1 + $0x70] sm:$0xff]
    %v373 = vld [vmem:[%s1 + $0x78] sm:$0xff]
    %v374 = vld [vmem:[%s1 + $0x80] sm:$0xff]
    %v375 = vld [vmem:[%s1 + $0x88] sm:$0xff]
    %v376 = vld [vmem:[%s1 + $0x90] sm:$0xff]
    %v377 = vld [vmem:[%s1 + $0x98] sm:$0xff]
    %v378 = vld [vmem:[%s1 + $0xa0] sm:$0xff]
    %v379 = vld [vmem:[%s1 + $0xa8] sm:$0xff]
    %v380 = vld [vmem:[%s1 + $0xb0] sm:$0xff]
    %v381 = vld [vmem:[%s1 + $0xb8] sm:$0xff]
    %v382 = vld [vmem:[%s1 + $0xc0] sm:$0xff]
    %v383 = vld [vmem:[%s1 + $0xc8] sm:$0xff]
    %v384 = vld [vmem:[%s1 + $0xd0] sm:$0xff]
    %v385 = vld [vmem:[%s1 + $0xd8] sm:$0xff]
    %v386 = vld [vmem:[%s1 + $0xe0] sm:$0xff]
    %v387 = vld [vmem:[%s1 + $0xe8] sm:$0xff]
    %v388 = vld [vmem:[%s1 + $0xf0] sm:$0xff]
    %v389 = vld [vmem:[%s1 + $0xf8] sm:$0xff]
    %v390 = vld [vmem:[%s1 + $0x100] sm:$0xff]
    %v391 = vld [vmem:[%s1 + $0x108] sm:$0xff]
    %v392 = vld [vmem:[%s1 + $0x110] sm:$0xff]
    %v393 = vld [vmem:[%s1 + $0x118] sm:$0xff]
    %v394 = vld [vmem:[%s1 + $0x120] sm:$0xff]
    %v395 = vld [vmem:[%s1 + $0x128] sm:$0xff]
    %v396 = vld [vmem:[%s1 + $0x130] sm:$0xff]
    %v397 = vld [vmem:[%s1 + $0x138] sm:$0xff]
    %v398 = vld [vmem:[%s1 + $0x140] sm:$0xff]
    %v399 = vld [vmem:[%s1 + $0x148] sm:$0xff]
    %v400 = vld [vmem:[%s1 + $0x150] sm:$0xff]
    %v401 = vld [vmem:[%s1 + $0x158] sm:$0xff]
    %v402 = vld [vmem:[%s1 + $0x160] sm:$0xff]
    %v403 = vld [vmem:[%s1 + $0x168] sm:$0xff]
    %v404 = vld [vmem:[%s1 + $0x170] sm:$0xff]
    %v405 = vld [vmem:[%s1 + $0x178] sm:$0xff]
    %v406 = vld [vmem:[%s1 + $0x180] sm:$0xff]
    %v407 = vld [vmem:[%s1 + $0x188] sm:$0xff]
    %v408 = vld [vmem:[%s1 + $0x190] sm:$0xff]
    %v409 = vld [vmem:[%s1 + $0x198] sm:$0xff]
    %v410 = vld [vmem:[%s1 + $0x1a0] sm:$0xff]
    %v411 = vld [vmem:[%s1 + $0x1a8] sm:$0xff]
    %v412 = vld [vmem:[%s1 + $0x1b0] sm:$0xff]
    %v413 = vld [vmem:[%s1 + $0x1b8] sm:$0xff]
    %v414 = vld [vmem:[%s1 + $0x1c0] sm:$0xff]
    %v415 = vld [vmem:[%s1 + $0x1c8] sm:$0xff]
    %v416 = vld [vmem:[%s1 + $0x1d0] sm:$0xff]
    %v417 = vld [vmem:[%s1 + $0x1d8] sm:$0xff]
    %v418 = vld [vmem:[%s1 + $0x1e0] sm:$0xff]
    %v419 = vld [vmem:[%s1 + $0x1e8] sm:$0xff]
    %v420 = vld [vmem:[%s1 + $0x1f0] sm:$0xff]
    %v421 = vld [vmem:[%s1 + $0x1f8] sm:$0xff]
    %v422 = vld [vmem:[%s1 + $0x200] sm:$0xff]
    %v423 = vld [vmem:[%s1 + $0x208] sm:$0xff]
    %v424 = vld [vmem:[%s1 + $0x210] sm:$0xff]
    %v425 = vld [vmem:[%s1 + $0x218] sm:$0xff]
    %v426 = vld [vmem:[%s1 + $0x220] sm:$0xff]
    %v427 = vld [vmem:[%s1 + $0x228] sm:$0xff]
    %v428 = vld [vmem:[%s1 + $0x230] sm:$0xff]
    %v429 = vld [vmem:[%s1 + $0x238] sm:$0xff]
    %v430 = vld [vmem:[%s1 + $0x240] sm:$0xff]
    %v431 = vld [vmem:[%s1 + $0x248] sm:$0xff]
    %v432 = vld [vmem:[%s1 + $0x250] sm:$0xff]
    %v433 = vld [vmem:[%s1 + $0x258] sm:$0xff]
    %v434 = vld [vmem:[%s1 + $0x260] sm:$0xff]
    %v435 = vld [vmem:[%s1 + $0x268] sm:$0xff]
    %v436 = vld [vmem:[%s1 + $0x270] sm:$0xff]
    %v437 = vld [vmem:[%s1 + $0x278] sm:$0xff]
    %v438 = vld [vmem:[%s1 + $0x280] sm:$0xff]
    %v439 = vld [vmem:[%s1 + $0x288] sm:$0xff]
    %v440 = vld [vmem:[%s1 + $0x290] sm:$0xff]
    %v441 = vld [vmem:[%s1 + $0x298] sm:$0xff]
    %v442 = vld [vmem:[%s1 + $0x2a0] sm:$0xff]
    %v443 = vld [vmem:[%s1 + $0x2a8] sm:$0xff]
    %v444 = vld [vmem:[%s1 + $0x2b0] sm:$0xff]
    %v445 = vld [vmem:[%s1 + $0x2b8] sm:$0xff]
    %v446 = vld [vmem:[%s1 + $0x2c0] sm:$0xff]
    %v447 = vld [vmem:[%s1 + $0x2c8] sm:$0xff]
    %v448 = vld [vmem:[%s1 + $0x2d0] sm:$0xff]
    %v449 = vld [vmem:[%s1 + $0x2d8] sm:$0xff]
    %v450 = vld [vmem:[%s1 + $0x2e0] sm:$0xff]
    %v451 = vld [vmem:[%s1 + $0x2e8] sm:$0xff]
    %v452 = vld [vmem:[%s1 + $0x2f0] sm:$0xff]
    %v453 = vld [vmem:[%s1 + $0x2f8] sm:$0xff]
    %v454 = vld [vmem:[%s1 + $0x300] sm:$0xff]
    %v455 = vld [vmem:[%s1 + $0x308] sm:$0xff]
    %v456 = vld [vmem:[%s1 + $0x310] sm:$0xff]
    %v457 = vld [vmem:[%s1 + $0x318] sm:$0xff]
    %v458 = vld [vmem:[%s1 + $0x320] sm:$0xff]
    %v459 = vld [vmem:[%s1 + $0x328] sm:$0xff]
    %v460 = vld [vmem:[%s1 + $0x330] sm:$0xff]
    %v461 = vld [vmem:[%s1 + $0x338] sm:$0xff]
    %v462 = vld [vmem:[%s1 + $0x340] sm:$0xff]
    %v463 = vld [vmem:[%s1 + $0x348] sm:$0xff]
    %v464 = vld [vmem:[%s1 + $0x350] sm:$0xff]
    %v465 = vld [vmem:[%s1 + $0x358] sm:$0xff]
    %v466 = vld [vmem:[%s1 + $0x360] sm:$0xff]
    %v467 = vld [vmem:[%s1 + $0x368] sm:$0xff]
    %v468 = vld [vmem:[%s1 + $0x370] sm:$0xff]
    %v469 = vld [vmem:[%s1 + $0x378] sm:$0xff]
    %v470 = vld [vmem:[%s1 + $0x380] sm:$0xff]
    %v471 = vld [vmem:[%s1 + $0x388] sm:$0xff]
    %v472 = vld [vmem:[%s1 + $0x390] sm:$0xff]
    %v473 = vld [vmem:[%s1 + $0x398] sm:$0xff]
    %v474 = vld [vmem:[%s1 + $0x3a0] sm:$0xff]
    %v475 = vld [vmem:[%s1 + $0x3a8] sm:$0xff]
    %v476 = vld [vmem:[%s1 + $0x3b0] sm:$0xff]
    %v477 = vld [vmem:[%s1 + $0x3b8] sm:$0xff]
    %v478 = vld [vmem:[%s1 + $0x3c0] sm:$0xff]
    %v479 = vld [vmem:[%s1 + $0x3c8] sm:$0xff]
    %v480 = vld [vmem:[%s1 + $0x3d0] sm:$0xff]
    %v481 = vld [vmem:[%s1 + $0x3d8] sm:$0xff]
    %v482 = vld [vmem:[%s1 + $0x3e0] sm:$0xff]
    %v483 = vld [vmem:[%s1 + $0x3e8] sm:$0xff]
    %v484 = vld [vmem:[%s1 + $0x3f0] sm:$0xff]
    %v485 = vld [vmem:[%s1 + $0x3f8] sm:$0xff]
    %v486 = vld [vmem:[%s1 + $0x400] sm:$0xff]
    %v487 = vld [vmem:[%s1 + $0x408] sm:$0xff]
    %v488 = vld [vmem:[%s1 + $0x410] sm:$0xff]
    %v489 = vld [vmem:[%s1 + $0x418] sm:$0xff]
    %v490 = vld [vmem:[%s1 + $0x420] sm:$0xff]
    %v491 = vld [vmem:[%s1 + $0x428] sm:$0xff]
    %v492 = vld [vmem:[%s1 + $0x430] sm:$0xff]
    %v493 = vld [vmem:[%s1 + $0x438] sm:$0xff]
    %v494 = vld [vmem:[%s1 + $0x440] sm:$0xff]
    %v495 = vld [vmem:[%s1 + $0x448] sm:$0xff]
    %v496 = vld [vmem:[%s1 + $0x450] sm:$0xff]
    %v497 = vld [vmem:[%s1 + $0x458] sm:$0xff]
    %v498 = vld [vmem:[%s1 + $0x460] sm:$0xff]
    %v499 = vld [vmem:[%s1 + $0x468] sm:$0xff]
    %v500 = vld [vmem:[%s1 + $0x470] sm:$0xff]
    %v501 = vld [vmem:[%s1 + $0x478] sm:$0xff]
    %v502 = vld [vmem:[%s1 + $0x480] sm:$0xff]
    %v503 = vld [vmem:[%s1 + $0x488] sm:$0xff]
    %v504 = vld [vmem:[%s1 + $0x490] sm:$0xff]
    %v505 = vld [vmem:[%s1 + $0x498] sm:$0xff]
    %v506 = vld [vmem:[%s1 + $0x4a0] sm:$0xff]
    %v507 = vld [vmem:[%s1 + $0x4a8] sm:$0xff]
    %v508 = vld [vmem:[%s1 + $0x4b0] sm:$0xff]
    %v509 = vld [vmem:[%s1 + $0x4b8] sm:$0xff]
    %v510 = vld [vmem:[%s1 + $0x4c0] sm:$0xff]
    %v511 = vld [vmem:[%s1 + $0x4c8] sm:$0xff]
    %v512 = vld [vmem:[%s1 + $0x4d0] sm:$0xff]
    %v513 = vld [vmem:[%s1 + $0x4d8] sm:$0xff]
    %v514 = vld [vmem:[%s1 + $0x4e0] sm:$0xff]
    %v515 = vld [vmem:[%s1 + $0x4e8] sm:$0xff]
    %v516 = vld [vmem:[%s1 + $0x4f0] sm:$0xff]
    %v517 = vld [vmem:[%s1 + $0x4f8] sm:$0xff]
    %v518 = vld [vmem:[%s1 + $0x500] sm:$0xff]
    %v519 = vld [vmem:[%s1 + $0x508] sm:$0xff]
    %v520 = vld [vmem:[%s1 + $0x510] sm:$0xff]
    %v521 = vld [vmem:[%s1 + $0x518] sm:$0xff]
    %v522 = vld [vmem:[%s1 + $0x520] sm:$0xff]
    %v523 = vld [vmem:[%s1 + $0x528] sm:$0xff]
    %v524 = vld [vmem:[%s1 + $0x530] sm:$0xff]
    %v525 = vld [vmem:[%s1 + $0x538] sm:$0xff]
    %v526 = vld [vmem:[%s1 + $0x540] sm:$0xff]
    %v527 = vld [vmem:[%s1 + $0x548] sm:$0xff]
    %v528 = vld [vmem:[%s1 + $0x550] sm:$0xff]
    %v529 = vld [vmem:[%s1 + $0x558] sm:$0xff]
    %v530 = vld [vmem:[%s1 + $0x560] sm:$0xff]
    %v531 = vld [vmem:[%s1 + $0x568] sm:$0xff]
    %v532 = vld [vmem:[%s1 + $0x570] sm:$0xff]
    %v533 = vld [vmem:[%s1 + $0x578] sm:$0xff]
    %v534 = vld [vmem:[%s1 + $0x580] sm:$0xff]
    %v535 = vld [vmem:[%s1 + $0x588] sm:$0xff]
    %v536 = vld [vmem:[%s1 + $0x590] sm:$0xff]
    %v537 = vld [vmem:[%s1 + $0x598] sm:$0xff]
    %v538 = vld [vmem:[%s1 + $0x5a0] sm:$0xff]
    %v539 = vld [vmem:[%s1 + $0x5a8] sm:$0xff]
    %v540 = vld [vmem:[%s1 + $0x5b0] sm:$0xff]
    %v541 = vld [vmem:[%s1 + $0x5b8] sm:$0xff]
    %v542 = vld [vmem:[%s1 + $0x5c0] sm:$0xff]
    %v543 = vld [vmem:[%s1 + $0x5c8] sm:$0xff]
    %v544 = vld [vmem:[%s1 + $0x5d0] sm:$0xff]
    %v545 = vld [vmem:[%s1 + $0x5d8] sm:$0xff]
    %v546 = vld [vmem:[%s1 + $0x5e0] sm:$0xff]
    %v547 = vld [vmem:[%s1 + $0x5e8] sm:$0xff]
    %v548 = vld [vmem:[%s1 + $0x5f0] sm:$0xff]
    %v549 = vld [vmem:[%s1 + $0x5f8] sm:$0xff]
    %v550 = vld [vmem:[%s1 + $0x600] sm:$0xff]
    %v551 = vld [vmem:[%s1 + $0x608] sm:$0xff]
    %v552 = vld [vmem:[%s1 + $0x610] sm:$0xff]
    %v553 = vld [vmem:[%s1 + $0x618] sm:$0xff]
    %v554 = vld [vmem:[%s1 + $0x620] sm:$0xff]
    %v555 = vld [vmem:[%s1 + $0x628] sm:$0xff]
    %v556 = vld [vmem:[%s1 + $0x630] sm:$0xff]
    %v557 = vld [vmem:[%s1 + $0x638] sm:$0xff]
    %v558 = vld [vmem:[%s1 + $0x640] sm:$0xff]
    %v559 = vld [vmem:[%s1 + $0x648] sm:$0xff]
    %v560 = vld [vmem:[%s1 + $0x650] sm:$0xff]
    %v561 = vld [vmem:[%s1 + $0x658] sm:$0xff]
    %v562 = vld [vmem:[%s1 + $0x660] sm:$0xff]
    %v563 = vld [vmem:[%s1 + $0x668] sm:$0xff]
    %v564 = vld [vmem:[%s1 + $0x670] sm:$0xff]
    %v565 = vld [vmem:[%s1 + $0x678] sm:$0xff]
    %v566 = vld [vmem:[%s1 + $0x680] sm:$0xff]
    %v567 = vld [vmem:[%s1 + $0x688] sm:$0xff]
    %v568 = vld [vmem:[%s1 + $0x690] sm:$0xff]
    %v569 = vld [vmem:[%s1 + $0x698] sm:$0xff]
    %v570 = vld [vmem:[%s1 + $0x6a0] sm:$0xff]
    %v571 = vld [vmem:[%s1 + $0x6a8] sm:$0xff]
    %v572 = vld [vmem:[%s1 + $0x6b0] sm:$0xff]
    %v573 = vld [vmem:[%s1 + $0x6b8] sm:$0xff]
    %v574 = vld [vmem:[%s1 + $0x6c0] sm:$0xff]
    %v575 = vld [vmem:[%s1 + $0x6c8] sm:$0xff]
    %v576 = vld [vmem:[%s1 + $0x6d0] sm:$0xff]
    %v577 = vld [vmem:[%s1 + $0x6d8] sm:$0xff]
    %v578 = vld [vmem:[%s1 + $0x6e0] sm:$0xff]
    %v579 = vld [vmem:[%s1 + $0x6e8] sm:$0xff]
    %v580 = vld [vmem:[%s1 + $0x6f0] sm:$0xff]
    %v581 = vld [vmem:[%s1 + $0x6f8] sm:$0xff]
    %v582 = vld [vmem:[%s1 + $0x700] sm:$0xff]
    %v583 = vld [vmem:[%s1 + $0x708] sm:$0xff]
    %v584 = vld [vmem:[%s1 + $0x710] sm:$0xff]
    %v585 = vld [vmem:[%s1 + $0x718] sm:$0xff]
    %v586 = vld [vmem:[%s1 + $0x720] sm:$0xff]
    %v587 = vld [vmem:[%s1 + $0x728] sm:$0xff]
    %v588 = vld [vmem:[%s1 + $0x730] sm:$0xff]
    %v589 = vld [vmem:[%s1 + $0x738] sm:$0xff]
    %v590 = vld [vmem:[%s1 + $0x740] sm:$0xff]
    %v591 = vld [vmem:[%s1 + $0x748] sm:$0xff]
    %v592 = vld [vmem:[%s1 + $0x750] sm:$0xff]
    %v593 = vld [vmem:[%s1 + $0x758] sm:$0xff]
    %v594 = vld [vmem:[%s1 + $0x760] sm:$0xff]
    %v595 = vld [vmem:[%s1 + $0x768] sm:$0xff]
    %v596 = vld [vmem:[%s1 + $0x770] sm:$0xff]
    %v597 = vld [vmem:[%s1 + $0x778] sm:$0xff]
    %v598 = vld [vmem:[%s1 + $0x780] sm:$0xff]
    %v599 = vld [vmem:[%s1 + $0x788] sm:$0xff]
    %v600 = vld [vmem:[%s1 + $0x790] sm:$0xff]
    %v601 = vld [vmem:[%s1 + $0x798] sm:$0xff]
    %v602 = vld [vmem:[%s1 + $0x7a0] sm:$0xff]
    %v603 = vld [vmem:[%s1 + $0x7a8] sm:$0xff]
    %v604 = vld [vmem:[%s1 + $0x7b0] sm:$0xff]
    %v605 = vld [vmem:[%s1 + $0x7b8] sm:$0xff]
    %v606 = vld [vmem:[%s1 + $0x7c0] sm:$0xff]
    %v607 = vld [vmem:[%s1 + $0x7c8] sm:$0xff]
    %v608 = vld [vmem:[%s1 + $0x7d0] sm:$0xff]
    %v609 = vld [vmem:[%s1 + $0x7d8] sm:$0xff]
    %v610 = vld [vmem:[%s1 + $0x7e0] sm:$0xff]
    %v611 = vld [vmem:[%s1 + $0x7e8] sm:$0xff]
    %v612 = vld [vmem:[%s1 + $0x7f0] sm:$0xff]
    %v613 = vld [vmem:[%s1 + $0x7f8] sm:$0xff]
    %v614 = vld [vmem:[%s1 + $0x800] sm:$0xff]
    %v615 = vld [vmem:[%s1 + $0x808] sm:$0xff]
    %v616 = vld [vmem:[%s1 + $0x810] sm:$0xff]
    %v617 = vld [vmem:[%s1 + $0x818] sm:$0xff]
    %v618 = vld [vmem:[%s1 + $0x820] sm:$0xff]
    %v619 = vld [vmem:[%s1 + $0x828] sm:$0xff]
    %v620 = vld [vmem:[%s1 + $0x830] sm:$0xff]
    %v621 = vld [vmem:[%s1 + $0x838] sm:$0xff]
    %v622 = vld [vmem:[%s1 + $0x840] sm:$0xff]
    %v623 = vld [vmem:[%s1 + $0x848] sm:$0xff]
    %v624 = vld [vmem:[%s1 + $0x850] sm:$0xff]
    %v625 = vld [vmem:[%s1 + $0x858] sm:$0xff]
    %v626 = vld [vmem:[%s1 + $0x860] sm:$0xff]
    %v627 = vld [vmem:[%s1 + $0x868] sm:$0xff]
    %v628 = vld [vmem:[%s1 + $0x870] sm:$0xff]
    %v629 = vld [vmem:[%s1 + $0x878] sm:$0xff]
    %v630 = vld [vmem:[%s1 + $0x880] sm:$0xff]
    %v631 = vld [vmem:[%s1 + $0x888] sm:$0xff]
    %v632 = vld [vmem:[%s1 + $0x890] sm:$0xff]
    %v633 = vld [vmem:[%s1 + $0x898] sm:$0xff]
    %v634 = vld [vmem:[%s1 + $0x8a0] sm:$0xff]
    %v635 = vld [vmem:[%s1 + $0x8a8] sm:$0xff]
    %v636 = vld [vmem:[%s1 + $0x8b0] sm:$0xff]
    %v637 = vld [vmem:[%s1 + $0x8b8] sm:$0xff]
    %v638 = vld [vmem:[%s1 + $0x8c0] sm:$0xff]
    %v639 = vld [vmem:[%s1 + $0x8c8] sm:$0xff]
    %v640 = vld [vmem:[%s1 + $0x8d0] sm:$0xff]
    %v641 = vld [vmem:[%s1 + $0x8d8] sm:$0xff]
    %v642 = vld [vmem:[%s1 + $0x8e0] sm:$0xff]
    %v643 = vld [vmem:[%s1 + $0x8e8] sm:$0xff]
    %v644 = vld [vmem:[%s1 + $0x8f0] sm:$0xff]
    %v645 = vld [vmem:[%s1 + $0x8f8] sm:$0xff]
    %v646 = vld [vmem:[%s1 + $0x900] sm:$0xff]
    %v647 = vld [vmem:[%s1 + $0x908] sm:$0xff]
    %v648 = vld [vmem:[%s1 + $0x910] sm:$0xff]
    %v649 = vld [vmem:[%s1 + $0x918] sm:$0xff]
    %v650 = vld [vmem:[%s1 + $0x920] sm:$0xff]
    %v651 = vld [vmem:[%s1 + $0x928] sm:$0xff]
    %v652 = vld [vmem:[%s1 + $0x930] sm:$0xff]
    %v653 = vld [vmem:[%s1 + $0x938] sm:$0xff]
    %v654 = vld [vmem:[%s1 + $0x940] sm:$0xff]
    %v655 = vld [vmem:[%s1 + $0x948] sm:$0xff]
    %v656 = vld [vmem:[%s1 + $0x950] sm:$0xff]
    %v657 = vld [vmem:[%s1 + $0x958] sm:$0xff]
    %v658 = vld [vmem:[%s1 + $0x960] sm:$0xff]
    %v659 = vld [vmem:[%s1 + $0x968] sm:$0xff]
    %v660 = vld [vmem:[%s1 + $0x970] sm:$0xff]
    %v661 = vld [vmem:[%s1 + $0x978] sm:$0xff]
    %v662 = vld [vmem:[%s1 + $0x980] sm:$0xff]
    %v663 = vld [vmem:[%s1 + $0x988] sm:$0xff]
    %v664 = vld [vmem:[%s1 + $0x990] sm:$0xff]
    %v665 = vld [vmem:[%s1 + $0x998] sm:$0xff]
    %v666 = vld [vmem:[%s1 + $0x9a0] sm:$0xff]
    %v667 = vld [vmem:[%s1 + $0x9a8] sm:$0xff]
    %v668 = vld [vmem:[%s1 + $0x9b0] sm:$0xff]
    %v669 = vld [vmem:[%s1 + $0x9b8] sm:$0xff]
    %v670 = vld [vmem:[%s1 + $0x9c0] sm:$0xff]
    %v671 = vld [vmem:[%s1 + $0x9c8] sm:$0xff]
    %v672 = vld [vmem:[%s1 + $0x9d0] sm:$0xff]
    %v673 = vld [vmem:[%s1 + $0x9d8] sm:$0xff]
    %v674 = vld [vmem:[%s1 + $0x9e0] sm:$0xff]
    %v675 = vld [vmem:[%s1 + $0x9e8] sm:$0xff]
    %v676 = vld [vmem:[%s1 + $0x9f0] sm:$0xff]
    %v677 = vld [vmem:[%s1 + $0x9f8] sm:$0xff]
    %v678 = vld [vmem:[%s1 + $0xa00] sm:$0xff]
    %v679 = vld [vmem:[%s1 + $0xa08] sm:$0xff]
    %v680 = vld [vmem:[%s1 + $0xa10] sm:$0xff]
    %v681 = vld [vmem:[%s1 + $0xa18] sm:$0xff]
    %v682 = vld [vmem:[%s1 + $0xa20] sm:$0xff]
    %v683 = vld [vmem:[%s1 + $0xa28] sm:$0xff]
    %v684 = vld [vmem:[%s1 + $0xa30] sm:$0xff]
    %v685 = vld [vmem:[%s1 + $0xa38] sm:$0xff]
    %v686 = vld [vmem:[%s1 + $0xa40] sm:$0xff]
    %v687 = vld [vmem:[%s1 + $0xa48] sm:$0xff]
    %v688 = vld [vmem:[%s1 + $0xa50] sm:$0xff]
    %v689 = vld [vmem:[%s1 + $0xa58] sm:$0xff]
    %v690 = vld [vmem:[%s1 + $0xa60] sm:$0xff]
    %v691 = vld [vmem:[%s1 + $0xa68] sm:$0xff]
    %v692 = vld [vmem:[%s1 + $0xa70] sm:$0xff]
    %v693 = vld [vmem:[%s1 + $0xa78] sm:$0xff]
    %v694 = vld [vmem:[%s1 + $0xa80] sm:$0xff]
    %v695 = vld [vmem:[%s1 + $0xa88] sm:$0xff]
    %v696 = vld [vmem:[%s1 + $0xa90] sm:$0xff]
    %v697 = vld [vmem:[%s1 + $0xa98] sm:$0xff]
    %v698 = vld [vmem:[%s1 + $0xaa0] sm:$0xff]
    %v699 = vld [vmem:[%s1 + $0xaa8] sm:$0xff]
    %v700 = vld [vmem:[%s1 + $0xab0] sm:$0xff]
    %v701 = vld [vmem:[%s1 + $0xab8] sm:$0xff]
    %v702 = vld [vmem:[%s1 + $0xac0] sm:$0xff]
    %v703 = vld [vmem:[%s1 + $0xac8] sm:$0xff]
    %v704 = vld [vmem:[%s1 + $0xad0] sm:$0xff]
    %v705 = vld [vmem:[%s1 + $0xad8] sm:$0xff]
    %v706 = vld [vmem:[%s1 + $0xae0] sm:$0xff]
    %v707 = vld [vmem:[%s1 + $0xae8] sm:$0xff]
    %v708 = vld [vmem:[%s1 + $0xaf0] sm:$0xff]
    %v709 = vld [vmem:[%s1 + $0xaf8] sm:$0xff]
    %v710 = vld [vmem:[%s1 + $0xb00] sm:$0xff]
    %v711 = vld [vmem:[%s1 + $0xb08] sm:$0xff]
    %v712 = vld [vmem:[%s1 + $0xb10] sm:$0xff]
    %v713 = vld [vmem:[%s1 + $0xb18] sm:$0xff]
    %v714 = vld [vmem:[%s1 + $0xb20] sm:$0xff]
    %v715 = vld [vmem:[%s1 + $0xb28] sm:$0xff]
    %v716 = vld [vmem:[%s1 + $0xb30] sm:$0xff]
    %v717 = vld [vmem:[%s1 + $0xb38] sm:$0xff]
    %v718 = vld [vmem:[%s1 + $0xb40] sm:$0xff]
    %v719 = vld [vmem:[%s1 + $0xb48] sm:$0xff]
    %v720 = vld [vmem:[%s1 + $0xb50] sm:$0xff]
    %v721 = vld [vmem:[%s1 + $0xb58] sm:$0xff]
    %v722 = vld [vmem:[%s1 + $0xb60] sm:$0xff]
    %v723 = vld [vmem:[%s1 + $0xb68] sm:$0xff]
    %v724 = vld [vmem:[%s1 + $0xb70] sm:$0xff]
    %v725 = vld [vmem:[%s1 + $0xb78] sm:$0xff]
    %v726 = vld [vmem:[%s1 + $0xb80] sm:$0xff]
    %v727 = vld [vmem:[%s1 + $0xb88] sm:$0xff]
    %v728 = vld [vmem:[%s1 + $0xb90] sm:$0xff]
    %v729 = vld [vmem:[%s1 + $0xb98] sm:$0xff]
    %v730 = vld [vmem:[%s1 + $0xba0] sm:$0xff]
    %v731 = vld [vmem:[%s1 + $0xba8] sm:$0xff]
    %v732 = vld [vmem:[%s1 + $0xbb0] sm:$0xff]
    %v733 = vld [vmem:[%s1 + $0xbb8] sm:$0xff]
    %v734 = vld [vmem:[%s1 + $0xbc0] sm:$0xff]
    %v735 = vld [vmem:[%s1 + $0xbc8] sm:$0xff]
    %v736 = vld [vmem:[%s1 + $0xbd0] sm:$0xff]
    %v737 = vld [vmem:[%s1 + $0xbd8] sm:$0xff]
    %v738 = vld [vmem:[%s1 + $0xbe0] sm:$0xff]
    %v739 = vld [vmem:[%s1 + $0xbe8] sm:$0xff]
    %v740 = vld [vmem:[%s1 + $0xbf0] sm:$0xff]
    %v741 = vld [vmem:[%s1 + $0xbf8] sm:$0xff]
    %v742 = vld [vmem:[%s2] sm:$0xf]
    %v744 = vlaneseq
    %v745 = vshrl.u32 %v744, 7
    %v746 = vsub.s32 0, %v745
    %v747 = vrot.slane %v742, %v746
    %v748 = vlaneseq
    %v749 = vshrl.u32 %v748, 7
    %v750 = vsub.s32 1, %v749
    %v751 = vrot.slane %v742, %v750
    %v752 = vlaneseq
    %v753 = vshrl.u32 %v752, 7
    %v754 = vsub.s32 2, %v753
    %v755 = vrot.slane %v742, %v754
    %v756 = vlaneseq
    %v757 = vshrl.u32 %v756, 7
    %v758 = vsub.s32 3, %v757
    %v759 = vrot.slane %v742, %v758
    %764 = vmatprep.subr.mxu0 %v359
    %765 = vmatpush1.msra.mxu0 %v358
    %766 = vmatprep.subr.mxu0 %v363
    %767 = vmatpush1.msra.mxu0 %v362
    %768 = vmatprep.subr.mxu0 %v367
    %769 = vmatpush1.msra.mxu0 %v366
    %770 = vmatprep.subr.mxu0 %v371
    %771 = vmatpush1.msra.mxu0 %v370
    %772 = vmatprep.subr.mxu0 %v375
    %773 = vmatpush1.msra.mxu0 %v374
    %774 = vmatprep.subr.mxu0 %v379
    %775 = vmatpush1.msra.mxu0 %v378
    %776 = vmatprep.subr.mxu0 %v383
    %777 = vmatpush1.msra.mxu0 %v382
    %778 = vmatprep.subr.mxu0 %v387
    %779 = vmatpush1.msra.mxu0 %v386
    %780 = vmatprep.subr.mxu0 %v391
    %781 = vmatpush1.msra.mxu0 %v390
    %782 = vmatprep.subr.mxu0 %v395
    %783 = vmatpush1.msra.mxu0 %v394
    %784 = vmatprep.subr.mxu0 %v399
    %785 = vmatpush1.msra.mxu0 %v398
    %786 = vmatprep.subr.mxu0 %v403
    %787 = vmatpush1.msra.mxu0 %v402
    %788 = vmatprep.subr.mxu0 %v407
    %789 = vmatpush1.msra.mxu0 %v406
    %790 = vmatprep.subr.mxu0 %v411
    %791 = vmatpush1.msra.mxu0 %v410
    %792 = vmatprep.subr.mxu0 %v415
    %793 = vmatpush1.msra.mxu0 %v414
    %794 = vmatprep.subr.mxu0 %v419
    %795 = vmatpush1.msra.mxu0 %v418
    %796 = vmatprep.subr.mxu0 %v423
    %797 = vmatpush1.msra.mxu0 %v422
    %798 = vmatprep.subr.mxu0 %v427
    %799 = vmatpush1.msra.mxu0 %v426
    %800 = vmatprep.subr.mxu0 %v431
    %801 = vmatpush1.msra.mxu0 %v430
    %802 = vmatprep.subr.mxu0 %v435
    %803 = vmatpush1.msra.mxu0 %v434
    %804 = vmatprep.subr.mxu0 %v439
    %805 = vmatpush1.msra.mxu0 %v438
    %806 = vmatprep.subr.mxu0 %v443
    %807 = vmatpush1.msra.mxu0 %v442
    %808 = vmatprep.subr.mxu0 %v447
    %809 = vmatpush1.msra.mxu0 %v446
    %810 = vmatprep.subr.mxu0 %v451
    %811 = vmatpush1.msra.mxu0 %v450
    %812 = vmatprep.subr.mxu0 %v455
    %813 = vmatpush1.msra.mxu0 %v454
    %814 = vmatprep.subr.mxu0 %v459
    %815 = vmatpush1.msra.mxu0 %v458
    %816 = vmatprep.subr.mxu0 %v463
    %817 = vmatpush1.msra.mxu0 %v462
    %818 = vmatprep.subr.mxu0 %v467
    %819 = vmatpush1.msra.mxu0 %v466
    %820 = vmatprep.subr.mxu0 %v471
    %821 = vmatpush1.msra.mxu0 %v470
    %822 = vmatprep.subr.mxu0 %v475
    %823 = vmatpush1.msra.mxu0 %v474
    %824 = vmatprep.subr.mxu0 %v479
    %825 = vmatpush1.msra.mxu0 %v478
    %826 = vmatprep.subr.mxu0 %v483
    %827 = vmatpush1.msra.mxu0 %v482
    %828 = vmatprep.mubr.f32.mxu0 %v40
    %829 = vmatmul.mubr.f32.gmra.mrb[0].mxu0 %v39
    %v830 = vpop.f32.mrb[0].mxu0
    %v831 = vadd.f32 %v747, %v830
    %v832 = vpop.f32.mrb[0].mxu0
    %v833 = vadd.f32 %v751, %v832
    %834 = vdwg.mxu0
    %835 = vmatprep.subr.mxu0 %v487
    %836 = vmatpush1.msra.mxu0 %v486
    %837 = vmatprep.subr.mxu0 %v491
    %838 = vmatpush1.msra.mxu0 %v490
    %839 = vmatprep.subr.mxu0 %v495
    %840 = vmatpush1.msra.mxu0 %v494
    %841 = vmatprep.subr.mxu0 %v499
    %842 = vmatpush1.msra.mxu0 %v498
    %843 = vmatprep.subr.mxu0 %v503
    %844 = vmatpush1.msra.mxu0 %v502
    %845 = vmatprep.subr.mxu0 %v507
    %846 = vmatpush1.msra.mxu0 %v506
    %847 = vmatprep.subr.mxu0 %v511
    %848 = vmatpush1.msra.mxu0 %v510
    %849 = vmatprep.subr.mxu0 %v515
    %850 = vmatpush1.msra.mxu0 %v514
    %851 = vmatprep.subr.mxu0 %v519
    %852 = vmatpush1.msra.mxu0 %v518
    %853 = vmatprep.subr.mxu0 %v523
    %854 = vmatpush1.msra.mxu0 %v522
    %855 = vmatprep.subr.mxu0 %v527
    %856 = vmatpush1.msra.mxu0 %v526
    %857 = vmatprep.subr.mxu0 %v531
    %858 = vmatpush1.msra.mxu0 %v530
    %859 = vmatprep.subr.mxu0 %v535
    %860 = vmatpush1.msra.mxu0 %v534
    %861 = vmatprep.subr.mxu0 %v539
    %862 = vmatpush1.msra.mxu0 %v538
    %863 = vmatprep.subr.mxu0 %v543
    %864 = vmatpush1.msra.mxu0 %v542
    %865 = vmatprep.subr.mxu0 %v547
    %866 = vmatpush1.msra.mxu0 %v546
    %867 = vmatprep.subr.mxu0 %v551
    %868 = vmatpush1.msra.mxu0 %v550
    %869 = vmatprep.subr.mxu0 %v555
    %870 = vmatpush1.msra.mxu0 %v554
    %871 = vmatprep.subr.mxu0 %v559
    %872 = vmatpush1.msra.mxu0 %v558
    %873 = vmatprep.subr.mxu0 %v563
    %874 = vmatpush1.msra.mxu0 %v562
    %875 = vmatprep.subr.mxu0 %v567
    %876 = vmatpush1.msra.mxu0 %v566
    %877 = vmatprep.subr.mxu0 %v571
    %878 = vmatpush1.msra.mxu0 %v570
    %879 = vmatprep.subr.mxu0 %v575
    %880 = vmatpush1.msra.mxu0 %v574
    %881 = vmatprep.subr.mxu0 %v579
    %882 = vmatpush1.msra.mxu0 %v578
    %883 = vmatprep.subr.mxu0 %v583
    %884 = vmatpush1.msra.mxu0 %v582
    %885 = vmatprep.subr.mxu0 %v587
    %886 = vmatpush1.msra.mxu0 %v586
    %887 = vmatprep.subr.mxu0 %v591
    %888 = vmatpush1.msra.mxu0 %v590
    %889 = vmatprep.subr.mxu0 %v595
    %890 = vmatpush1.msra.mxu0 %v594
    %891 = vmatprep.subr.mxu0 %v599
    %892 = vmatpush1.msra.mxu0 %v598
    %893 = vmatprep.subr.mxu0 %v603
    %894 = vmatpush1.msra.mxu0 %v602
    %895 = vmatprep.subr.mxu0 %v607
    %896 = vmatpush1.msra.mxu0 %v606
    %897 = vmatprep.subr.mxu0 %v611
    %898 = vmatpush1.msra.mxu0 %v610
    %899 = vmatprep.mubr.f32.mxu0 %v42
    %900 = vmatmul.mubr.f32.gmra.mrb[0].mxu0 %v41
    %v901 = vpop.f32.mrb[0].mxu0
    %v902 = vadd.f32 %v831, %v901
    %v903 = vpop.f32.mrb[0].mxu0
    %v904 = vadd.f32 %v833, %v903
    %905 = vdwg.mxu0
    %906 = vmatprep.subr.mxu0 %v615
    %907 = vmatpush1.msra.mxu0 %v614
    %908 = vmatprep.subr.mxu0 %v619
    %909 = vmatpush1.msra.mxu0 %v618
    %910 = vmatprep.subr.mxu0 %v623
    %911 = vmatpush1.msra.mxu0 %v622
    %912 = vmatprep.subr.mxu0 %v627
    %913 = vmatpush1.msra.mxu0 %v626
    %914 = vmatprep.subr.mxu0 %v631
    %915 = vmatpush1.msra.mxu0 %v630
    %916 = vmatprep.subr.mxu0 %v635
    %917 = vmatpush1.msra.mxu0 %v634
    %918 = vmatprep.subr.mxu0 %v639
    %919 = vmatpush1.msra.mxu0 %v638
    %920 = vmatprep.subr.mxu0 %v643
    %921 = vmatpush1.msra.mxu0 %v642
    %922 = vmatprep.subr.mxu0 %v647
    %923 = vmatpush1.msra.mxu0 %v646
    %924 = vmatprep.subr.mxu0 %v651
    %925 = vmatpush1.msra.mxu0 %v650
    %926 = vmatprep.subr.mxu0 %v655
    %927 = vmatpush1.msra.mxu0 %v654
    %928 = vmatprep.subr.mxu0 %v659
    %929 = vmatpush1.msra.mxu0 %v658
    %930 = vmatprep.subr.mxu0 %v663
    %931 = vmatpush1.msra.mxu0 %v662
    %932 = vmatprep.subr.mxu0 %v667
    %933 = vmatpush1.msra.mxu0 %v666
    %934 = vmatprep.subr.mxu0 %v671
    %935 = vmatpush1.msra.mxu0 %v670
    %936 = vmatprep.subr.mxu0 %v675
    %937 = vmatpush1.msra.mxu0 %v674
    %938 = vmatprep.subr.mxu0 %v679
    %939 = vmatpush1.msra.mxu0 %v678
    %940 = vmatprep.subr.mxu0 %v683
    %941 = vmatpush1.msra.mxu0 %v682
    %942 = vmatprep.subr.mxu0 %v687
    %943 = vmatpush1.msra.mxu0 %v686
    %944 = vmatprep.subr.mxu0 %v691
    %945 = vmatpush1.msra.mxu0 %v690
    %946 = vmatprep.subr.mxu0 %v695
    %947 = vmatpush1.msra.mxu0 %v694
    %948 = vmatprep.subr.mxu0 %v699
    %949 = vmatpush1.msra.mxu0 %v698
    %950 = vmatprep.subr.mxu0 %v703
    %951 = vmatpush1.msra.mxu0 %v702
    %952 = vmatprep.subr.mxu0 %v707
    %953 = vmatpush1.msra.mxu0 %v706
    %954 = vmatprep.subr.mxu0 %v711
    %955 = vmatpush1.msra.mxu0 %v710
    %956 = vmatprep.subr.mxu0 %v715
    %957 = vmatpush1.msra.mxu0 %v714
    %958 = vmatprep.subr.mxu0 %v719
    %959 = vmatpush1.msra.mxu0 %v718
    %960 = vmatprep.subr.mxu0 %v723
    %961 = vmatpush1.msra.mxu0 %v722
    %962 = vmatprep.subr.mxu0 %v727
    %963 = vmatpush1.msra.mxu0 %v726
    %964 = vmatprep.subr.mxu0 %v731
    %965 = vmatpush1.msra.mxu0 %v730
    %966 = vmatprep.subr.mxu0 %v735
    %967 = vmatpush1.msra.mxu0 %v734
    %968 = vmatprep.subr.mxu0 %v739
    %969 = vmatpush1.msra.mxu0 %v738
    %970 = vmatprep.mubr.f32.mxu0 %v44
    %971 = vmatmul.mubr.f32.gmra.mrb[0].mxu0 %v43
    %v972 = vpop.f32.mrb[0].mxu0
    %v973 = vadd.f32 %v902, %v972
    %v974 = vpop.f32.mrb[0].mxu0
    %v975 = vadd.f32 %v904, %v974
    %976 = vdwg.mxu0
    %977 = vmatprep.subr.mxu0 %v361
    %978 = vmatpush1.msra.mxu0 %v360
    %979 = vmatprep.subr.mxu0 %v365
    %980 = vmatpush1.msra.mxu0 %v364
    %981 = vmatprep.subr.mxu0 %v369
    %982 = vmatpush1.msra.mxu0 %v368
    %983 = vmatprep.subr.mxu0 %v373
    %984 = vmatpush1.msra.mxu0 %v372
    %985 = vmatprep.subr.mxu0 %v377
    %986 = vmatpush1.msra.mxu0 %v376
    %987 = vmatprep.subr.mxu0 %v381
    %988 = vmatpush1.msra.mxu0 %v380
    %989 = vmatprep.subr.mxu0 %v385
    %990 = vmatpush1.msra.mxu0 %v384
    %991 = vmatprep.subr.mxu0 %v389
    %992 = vmatpush1.msra.mxu0 %v388
    %993 = vmatprep.subr.mxu0 %v393
    %994 = vmatpush1.msra.mxu0 %v392
    %995 = vmatprep.subr.mxu0 %v397
    %996 = vmatpush1.msra.mxu0 %v396
    %997 = vmatprep.subr.mxu0 %v401
    %998 = vmatpush1.msra.mxu0 %v400
    %999 = vmatprep.subr.mxu0 %v405
    %1000 = vmatpush1.msra.mxu0 %v404
    %1001 = vmatprep.subr.mxu0 %v409
    %1002 = vmatpush1.msra.mxu0 %v408
    %1003 = vmatprep.subr.mxu0 %v413
    %1004 = vmatpush1.msra.mxu0 %v412
    %1005 = vmatprep.subr.mxu0 %v417
    %1006 = vmatpush1.msra.mxu0 %v416
    %1007 = vmatprep.subr.mxu0 %v421
    %1008 = vmatpush1.msra.mxu0 %v420
    %1009 = vmatprep.subr.mxu0 %v425
    %1010 = vmatpush1.msra.mxu0 %v424
    %1011 = vmatprep.subr.mxu0 %v429
    %1012 = vmatpush1.msra.mxu0 %v428
    %1013 = vmatprep.subr.mxu0 %v433
    %1014 = vmatpush1.msra.mxu0 %v432
    %1015 = vmatprep.subr.mxu0 %v437
    %1016 = vmatpush1.msra.mxu0 %v436
    %1017 = vmatprep.subr.mxu0 %v441
    %1018 = vmatpush1.msra.mxu0 %v440
    %1019 = vmatprep.subr.mxu0 %v445
    %1020 = vmatpush1.msra.mxu0 %v444
    %1021 = vmatprep.subr.mxu0 %v449
    %1022 = vmatpush1.msra.mxu0 %v448
    %1023 = vmatprep.subr.mxu0 %v453
    %1024 = vmatpush1.msra.mxu0 %v452
    %1025 = vmatprep.subr.mxu0 %v457
    %1026 = vmatpush1.msra.mxu0 %v456
    %1027 = vmatprep.subr.mxu0 %v461
    %1028 = vmatpush1.msra.mxu0 %v460
    %1029 = vmatprep.subr.mxu0 %v465
    %1030 = vmatpush1.msra.mxu0 %v464
    %1031 = vmatprep.subr.mxu0 %v469
    %1032 = vmatpush1.msra.mxu0 %v468
    %1033 = vmatprep.subr.mxu0 %v473
    %1034 = vmatpush1.msra.mxu0 %v472
    %1035 = vmatprep.subr.mxu0 %v477
    %1036 = vmatpush1.msra.mxu0 %v476
    %1037 = vmatprep.subr.mxu0 %v481
    %1038 = vmatpush1.msra.mxu0 %v480
    %1039 = vmatprep.subr.mxu0 %v485
    %1040 = vmatpush1.msra.mxu0 %v484
    %1041 = vmatprep.mubr.f32.mxu0 %v40
    %1042 = vmatmul.mubr.f32.gmra.mrb[0].mxu0 %v39
    %v1043 = vpop.f32.mrb[0].mxu0
    %v1044 = vadd.f32 %v755, %v1043
    %v1045 = vpop.f32.mrb[0].mxu0
    %v1046 = vadd.f32 %v759, %v1045
    %1047 = vdwg.mxu0
    %1048 = vmatprep.subr.mxu0 %v489
    %1049 = vmatpush1.msra.mxu0 %v488
    %1050 = vmatprep.subr.mxu0 %v493
    %1051 = vmatpush1.msra.mxu0 %v492
    %1052 = vmatprep.subr.mxu0 %v497
    %1053 = vmatpush1.msra.mxu0 %v496
    %1054 = vmatprep.subr.mxu0 %v501
    %1055 = vmatpush1.msra.mxu0 %v500
    %1056 = vmatprep.subr.mxu0 %v505
    %1057 = vmatpush1.msra.mxu0 %v504
    %1058 = vmatprep.subr.mxu0 %v509
    %1059 = vmatpush1.msra.mxu0 %v508
    %1060 = vmatprep.subr.mxu0 %v513
    %1061 = vmatpush1.msra.mxu0 %v512
    %1062 = vmatprep.subr.mxu0 %v517
    %1063 = vmatpush1.msra.mxu0 %v516
    %1064 = vmatprep.subr.mxu0 %v521
    %1065 = vmatpush1.msra.mxu0 %v520
    %1066 = vmatprep.subr.mxu0 %v525
    %1067 = vmatpush1.msra.mxu0 %v524
    %1068 = vmatprep.subr.mxu0 %v529
    %1069 = vmatpush1.msra.mxu0 %v528
    %1070 = vmatprep.subr.mxu0 %v533
    %1071 = vmatpush1.msra.mxu0 %v532
    %1072 = vmatprep.subr.mxu0 %v537
    %1073 = vmatpush1.msra.mxu0 %v536
    %1074 = vmatprep.subr.mxu0 %v541
    %1075 = vmatpush1.msra.mxu0 %v540
    %1076 = vmatprep.subr.mxu0 %v545
    %1077 = vmatpush1.msra.mxu0 %v544
    %1078 = vmatprep.subr.mxu0 %v549
    %1079 = vmatpush1.msra.mxu0 %v548
    %1080 = vmatprep.subr.mxu0 %v553
    %1081 = vmatpush1.msra.mxu0 %v552
    %1082 = vmatprep.subr.mxu0 %v557
    %1083 = vmatpush1.msra.mxu0 %v556
    %1084 = vmatprep.subr.mxu0 %v561
    %1085 = vmatpush1.msra.mxu0 %v560
    %1086 = vmatprep.subr.mxu0 %v565
    %1087 = vmatpush1.msra.mxu0 %v564
    %1088 = vmatprep.subr.mxu0 %v569
    %1089 = vmatpush1.msra.mxu0 %v568
    %1090 = vmatprep.subr.mxu0 %v573
    %1091 = vmatpush1.msra.mxu0 %v572
    %1092 = vmatprep.subr.mxu0 %v577
    %1093 = vmatpush1.msra.mxu0 %v576
    %1094 = vmatprep.subr.mxu0 %v581
    %1095 = vmatpush1.msra.mxu0 %v580
    %1096 = vmatprep.subr.mxu0 %v585
    %1097 = vmatpush1.msra.mxu0 %v584
    %1098 = vmatprep.subr.mxu0 %v589
    %1099 = vmatpush1.msra.mxu0 %v588
    %1100 = vmatprep.subr.mxu0 %v593
    %1101 = vmatpush1.msra.mxu0 %v592
    %1102 = vmatprep.subr.mxu0 %v597
    %1103 = vmatpush1.msra.mxu0 %v596
    %1104 = vmatprep.subr.mxu0 %v601
    %1105 = vmatpush1.msra.mxu0 %v600
    %1106 = vmatprep.subr.mxu0 %v605
    %1107 = vmatpush1.msra.mxu0 %v604
    %1108 = vmatprep.subr.mxu0 %v609
    %1109 = vmatpush1.msra.mxu0 %v608
    %1110 = vmatprep.subr.mxu0 %v613
    %1111 = vmatpush1.msra.mxu0 %v612
    %1112 = vmatprep.mubr.f32.mxu0 %v42
    %1113 = vmatmul.mubr.f32.gmra.mrb[0].mxu0 %v41
    %v1114 = vpop.f32.mrb[0].mxu0
    %v1115 = vadd.f32 %v1044, %v1114
    %v1116 = vpop.f32.mrb[0].mxu0
    %v1117 = vadd.f32 %v1046, %v1116
    %1118 = vdwg.mxu0
    %1119 = vmatprep.subr.mxu0 %v617
    %1120 = vmatpush1.msra.mxu0 %v616
    %1121 = vmatprep.subr.mxu0 %v621
    %1122 = vmatpush1.msra.mxu0 %v620
    %1123 = vmatprep.subr.mxu0 %v625
    %1124 = vmatpush1.msra.mxu0 %v624
    %1125 = vmatprep.subr.mxu0 %v629
    %1126 = vmatpush1.msra.mxu0 %v628
    %1127 = vmatprep.subr.mxu0 %v633
    %1128 = vmatpush1.msra.mxu0 %v632
    %1129 = vmatprep.subr.mxu0 %v637
    %1130 = vmatpush1.msra.mxu0 %v636
    %1131 = vmatprep.subr.mxu0 %v641
    %1132 = vmatpush1.msra.mxu0 %v640
    %1133 = vmatprep.subr.mxu0 %v645
    %1134 = vmatpush1.msra.mxu0 %v644
    %1135 = vmatprep.subr.mxu0 %v649
    %1136 = vmatpush1.msra.mxu0 %v648
    %1137 = vmatprep.subr.mxu0 %v653
    %1138 = vmatpush1.msra.mxu0 %v652
    %1139 = vmatprep.subr.mxu0 %v657
    %1140 = vmatpush1.msra.mxu0 %v656
    %1141 = vmatprep.subr.mxu0 %v661
    %1142 = vmatpush1.msra.mxu0 %v660
    %1143 = vmatprep.subr.mxu0 %v665
    %1144 = vmatpush1.msra.mxu0 %v664
    %1145 = vmatprep.subr.mxu0 %v669
    %1146 = vmatpush1.msra.mxu0 %v668
    %1147 = vmatprep.subr.mxu0 %v673
    %1148 = vmatpush1.msra.mxu0 %v672
    %1149 = vmatprep.subr.mxu0 %v677
    %1150 = vmatpush1.msra.mxu0 %v676
    %1151 = vmatprep.subr.mxu0 %v681
    %1152 = vmatpush1.msra.mxu0 %v680
    %1153 = vmatprep.subr.mxu0 %v685
    %1154 = vmatpush1.msra.mxu0 %v684
    %1155 = vmatprep.subr.mxu0 %v689
    %1156 = vmatpush1.msra.mxu0 %v688
    %1157 = vmatprep.subr.mxu0 %v693
    %1158 = vmatpush1.msra.mxu0 %v692
    %1159 = vmatprep.subr.mxu0 %v697
    %1160 = vmatpush1.msra.mxu0 %v696
    %1161 = vmatprep.subr.mxu0 %v701
    %1162 = vmatpush1.msra.mxu0 %v700
    %1163 = vmatprep.subr.mxu0 %v705
    %1164 = vmatpush1.msra.mxu0 %v704
    %1165 = vmatprep.subr.mxu0 %v709
    %1166 = vmatpush1.msra.mxu0 %v708
    %1167 = vmatprep.subr.mxu0 %v713
    %1168 = vmatpush1.msra.mxu0 %v712
    %1169 = vmatprep.subr.mxu0 %v717
    %1170 = vmatpush1.msra.mxu0 %v716
    %1171 = vmatprep.subr.mxu0 %v721
    %1172 = vmatpush1.msra.mxu0 %v720
    %1173 = vmatprep.subr.mxu0 %v725
    %1174 = vmatpush1.msra.mxu0 %v724
    %1175 = vmatprep.subr.mxu0 %v729
    %1176 = vmatpush1.msra.mxu0 %v728
    %1177 = vmatprep.subr.mxu0 %v733
    %1178 = vmatpush1.msra.mxu0 %v732
    %1179 = vmatprep.subr.mxu0 %v737
    %1180 = vmatpush1.msra.mxu0 %v736
    %1181 = vmatprep.subr.mxu0 %v741
    %1182 = vmatpush1.msra.mxu0 %v740
    %1183 = vmatprep.mubr.f32.mxu0 %v44
    %1184 = vmatmul.mubr.f32.gmra.mrb[0].mxu0 %v43
    %v1185 = vpop.f32.mrb[0].mxu0
    %v1186 = vadd.f32 %v1115, %v1185
    %v1187 = vpop.f32.mrb[0].mxu0
    %v1188 = vadd.f32 %v1117, %v1187
    %1189 = vdwg.mxu0
    %v1190 = vld [vmem:[%s5] sm:$0xff]
    %v1191 = vld [vmem:[%s5 + $0x8] sm:$0xff]
    %v1192 = vld [vmem:[%s5 + $0x10] sm:$0xff]
    %v1193 = vld [vmem:[%s5 + $0x18] sm:$0xff]
    %v1194 = vld [vmem:[%s5 + $0x20] sm:$0xff]
    %v1195 = vld [vmem:[%s5 + $0x28] sm:$0xff]
    %v1196 = vld [vmem:[%s5 + $0x30] sm:$0xff]
    %v1197 = vld [vmem:[%s5 + $0x38] sm:$0xff]
    %v1198 = vld [vmem:[%s5 + $0x40] sm:$0xff]
    %v1199 = vld [vmem:[%s5 + $0x48] sm:$0xff]
    %v1200 = vld [vmem:[%s5 + $0x50] sm:$0xff]
    %v1201 = vld [vmem:[%s5 + $0x58] sm:$0xff]
    %v1202 = vld [vmem:[%s5 + $0x60] sm:$0xff]
    %v1203 = vld [vmem:[%s5 + $0x68] sm:$0xff]
    %v1204 = vld [vmem:[%s5 + $0x70] sm:$0xff]
    %v1205 = vld [vmem:[%s5 + $0x78] sm:$0xff]
    %v1206 = vld [vmem:[%s5 + $0x80] sm:$0xff]
    %v1207 = vld [vmem:[%s5 + $0x88] sm:$0xff]
    %v1208 = vld [vmem:[%s5 + $0x90] sm:$0xff]
    %v1209 = vld [vmem:[%s5 + $0x98] sm:$0xff]
    %v1210 = vld [vmem:[%s5 + $0xa0] sm:$0xff]
    %v1211 = vld [vmem:[%s5 + $0xa8] sm:$0xff]
    %v1212 = vld [vmem:[%s5 + $0xb0] sm:$0xff]
    %v1213 = vld [vmem:[%s5 + $0xb8] sm:$0xff]
    %v1214 = vld [vmem:[%s5 + $0xc0] sm:$0xff]
    %v1215 = vld [vmem:[%s5 + $0xc8] sm:$0xff]
    %v1216 = vld [vmem:[%s5 + $0xd0] sm:$0xff]
    %v1217 = vld [vmem:[%s5 + $0xd8] sm:$0xff]
    %v1218 = vld [vmem:[%s5 + $0xe0] sm:$0xff]
    %v1219 = vld [vmem:[%s5 + $0xe8] sm:$0xff]
    %v1220 = vld [vmem:[%s5 + $0xf0] sm:$0xff]
    %v1221 = vld [vmem:[%s5 + $0xf8] sm:$0xff]
    %v1222 = vld [vmem:[%s5 + $0x100] sm:$0xff]
    %v1223 = vld [vmem:[%s5 + $0x108] sm:$0xff]
    %v1224 = vld [vmem:[%s5 + $0x110] sm:$0xff]
    %v1225 = vld [vmem:[%s5 + $0x118] sm:$0xff]
    %v1226 = vld [vmem:[%s5 + $0x120] sm:$0xff]
    %v1227 = vld [vmem:[%s5 + $0x128] sm:$0xff]
    %v1228 = vld [vmem:[%s5 + $0x130] sm:$0xff]
    %v1229 = vld [vmem:[%s5 + $0x138] sm:$0xff]
    %v1230 = vld [vmem:[%s5 + $0x140] sm:$0xff]
    %v1231 = vld [vmem:[%s5 + $0x148] sm:$0xff]
    %v1232 = vld [vmem:[%s5 + $0x150] sm:$0xff]
    %v1233 = vld [vmem:[%s5 + $0x158] sm:$0xff]
    %v1234 = vld [vmem:[%s5 + $0x160] sm:$0xff]
    %v1235 = vld [vmem:[%s5 + $0x168] sm:$0xff]
    %v1236 = vld [vmem:[%s5 + $0x170] sm:$0xff]
    %v1237 = vld [vmem:[%s5 + $0x178] sm:$0xff]
    %v1238 = vld [vmem:[%s5 + $0x180] sm:$0xff]
    %v1239 = vld [vmem:[%s5 + $0x188] sm:$0xff]
    %v1240 = vld [vmem:[%s5 + $0x190] sm:$0xff]
    %v1241 = vld [vmem:[%s5 + $0x198] sm:$0xff]
    %v1242 = vld [vmem:[%s5 + $0x1a0] sm:$0xff]
    %v1243 = vld [vmem:[%s5 + $0x1a8] sm:$0xff]
    %v1244 = vld [vmem:[%s5 + $0x1b0] sm:$0xff]
    %v1245 = vld [vmem:[%s5 + $0x1b8] sm:$0xff]
    %v1246 = vld [vmem:[%s5 + $0x1c0] sm:$0xff]
    %v1247 = vld [vmem:[%s5 + $0x1c8] sm:$0xff]
    %v1248 = vld [vmem:[%s5 + $0x1d0] sm:$0xff]
    %v1249 = vld [vmem:[%s5 + $0x1d8] sm:$0xff]
    %v1250 = vld [vmem:[%s5 + $0x1e0] sm:$0xff]
    %v1251 = vld [vmem:[%s5 + $0x1e8] sm:$0xff]
    %v1252 = vld [vmem:[%s5 + $0x1f0] sm:$0xff]
    %v1253 = vld [vmem:[%s5 + $0x1f8] sm:$0xff]
    %v1254 = vld [vmem:[%s5 + $0x200] sm:$0xff]
    %v1255 = vld [vmem:[%s5 + $0x208] sm:$0xff]
    %v1256 = vld [vmem:[%s5 + $0x210] sm:$0xff]
    %v1257 = vld [vmem:[%s5 + $0x218] sm:$0xff]
    %v1258 = vld [vmem:[%s5 + $0x220] sm:$0xff]
    %v1259 = vld [vmem:[%s5 + $0x228] sm:$0xff]
    %v1260 = vld [vmem:[%s5 + $0x230] sm:$0xff]
    %v1261 = vld [vmem:[%s5 + $0x238] sm:$0xff]
    %v1262 = vld [vmem:[%s5 + $0x240] sm:$0xff]
    %v1263 = vld [vmem:[%s5 + $0x248] sm:$0xff]
    %v1264 = vld [vmem:[%s5 + $0x250] sm:$0xff]
    %v1265 = vld [vmem:[%s5 + $0x258] sm:$0xff]
    %v1266 = vld [vmem:[%s5 + $0x260] sm:$0xff]
    %v1267 = vld [vmem:[%s5 + $0x268] sm:$0xff]
    %v1268 = vld [vmem:[%s5 + $0x270] sm:$0xff]
    %v1269 = vld [vmem:[%s5 + $0x278] sm:$0xff]
    %v1270 = vld [vmem:[%s5 + $0x280] sm:$0xff]
    %v1271 = vld [vmem:[%s5 + $0x288] sm:$0xff]
    %v1272 = vld [vmem:[%s5 + $0x290] sm:$0xff]
    %v1273 = vld [vmem:[%s5 + $0x298] sm:$0xff]
    %v1274 = vld [vmem:[%s5 + $0x2a0] sm:$0xff]
    %v1275 = vld [vmem:[%s5 + $0x2a8] sm:$0xff]
    %v1276 = vld [vmem:[%s5 + $0x2b0] sm:$0xff]
    %v1277 = vld [vmem:[%s5 + $0x2b8] sm:$0xff]
    %v1278 = vld [vmem:[%s5 + $0x2c0] sm:$0xff]
    %v1279 = vld [vmem:[%s5 + $0x2c8] sm:$0xff]
    %v1280 = vld [vmem:[%s5 + $0x2d0] sm:$0xff]
    %v1281 = vld [vmem:[%s5 + $0x2d8] sm:$0xff]
    %v1282 = vld [vmem:[%s5 + $0x2e0] sm:$0xff]
    %v1283 = vld [vmem:[%s5 + $0x2e8] sm:$0xff]
    %v1284 = vld [vmem:[%s5 + $0x2f0] sm:$0xff]
    %v1285 = vld [vmem:[%s5 + $0x2f8] sm:$0xff]
    %v1286 = vld [vmem:[%s5 + $0x300] sm:$0xff]
    %v1287 = vld [vmem:[%s5 + $0x308] sm:$0xff]
    %v1288 = vld [vmem:[%s5 + $0x310] sm:$0xff]
    %v1289 = vld [vmem:[%s5 + $0x318] sm:$0xff]
    %v1290 = vld [vmem:[%s5 + $0x320] sm:$0xff]
    %v1291 = vld [vmem:[%s5 + $0x328] sm:$0xff]
    %v1292 = vld [vmem:[%s5 + $0x330] sm:$0xff]
    %v1293 = vld [vmem:[%s5 + $0x338] sm:$0xff]
    %v1294 = vld [vmem:[%s5 + $0x340] sm:$0xff]
    %v1295 = vld [vmem:[%s5 + $0x348] sm:$0xff]
    %v1296 = vld [vmem:[%s5 + $0x350] sm:$0xff]
    %v1297 = vld [vmem:[%s5 + $0x358] sm:$0xff]
    %v1298 = vld [vmem:[%s5 + $0x360] sm:$0xff]
    %v1299 = vld [vmem:[%s5 + $0x368] sm:$0xff]
    %v1300 = vld [vmem:[%s5 + $0x370] sm:$0xff]
    %v1301 = vld [vmem:[%s5 + $0x378] sm:$0xff]
    %v1302 = vld [vmem:[%s5 + $0x380] sm:$0xff]
    %v1303 = vld [vmem:[%s5 + $0x388] sm:$0xff]
    %v1304 = vld [vmem:[%s5 + $0x390] sm:$0xff]
    %v1305 = vld [vmem:[%s5 + $0x398] sm:$0xff]
    %v1306 = vld [vmem:[%s5 + $0x3a0] sm:$0xff]
    %v1307 = vld [vmem:[%s5 + $0x3a8] sm:$0xff]
    %v1308 = vld [vmem:[%s5 + $0x3b0] sm:$0xff]
    %v1309 = vld [vmem:[%s5 + $0x3b8] sm:$0xff]
    %v1310 = vld [vmem:[%s5 + $0x3c0] sm:$0xff]
    %v1311 = vld [vmem:[%s5 + $0x3c8] sm:$0xff]
    %v1312 = vld [vmem:[%s5 + $0x3d0] sm:$0xff]
    %v1313 = vld [vmem:[%s5 + $0x3d8] sm:$0xff]
    %v1314 = vld [vmem:[%s5 + $0x3e0] sm:$0xff]
    %v1315 = vld [vmem:[%s5 + $0x3e8] sm:$0xff]
    %v1316 = vld [vmem:[%s5 + $0x3f0] sm:$0xff]
    %v1317 = vld [vmem:[%s5 + $0x3f8] sm:$0xff]
    %v1318 = vld [vmem:[%s6] sm:$0x3]
    %v1320 = vlaneseq
    %v1321 = vshrl.u32 %v1320, 7
    %v1322 = vsub.s32 0, %v1321
    %v1323 = vrot.slane %v1318, %v1322
    %v1324 = vlaneseq
    %v1325 = vshrl.u32 %v1324, 7
    %v1326 = vsub.s32 1, %v1325
    %v1327 = vrot.slane %v1318, %v1326
    %1330 = vmatprep.subr.mxu0 %v1191
    %1331 = vmatpush1.msra.mxu0 %v1190
    %1332 = vmatprep.subr.mxu0 %v1193
    %1333 = vmatpush1.msra.mxu0 %v1192
    %1334 = vmatprep.subr.mxu0 %v1195
    %1335 = vmatpush1.msra.mxu0 %v1194
    %1336 = vmatprep.subr.mxu0 %v1197
    %1337 = vmatpush1.msra.mxu0 %v1196
    %1338 = vmatprep.subr.mxu0 %v1199
    %1339 = vmatpush1.msra.mxu0 %v1198
    %1340 = vmatprep.subr.mxu0 %v1201
    %1341 = vmatpush1.msra.mxu0 %v1200
    %1342 = vmatprep.subr.mxu0 %v1203
    %1343 = vmatpush1.msra.mxu0 %v1202
    %1344 = vmatprep.subr.mxu0 %v1205
    %1345 = vmatpush1.msra.mxu0 %v1204
    %1346 = vmatprep.subr.mxu0 %v1207
    %1347 = vmatpush1.msra.mxu0 %v1206
    %1348 = vmatprep.subr.mxu0 %v1209
    %1349 = vmatpush1.msra.mxu0 %v1208
    %1350 = vmatprep.subr.mxu0 %v1211
    %1351 = vmatpush1.msra.mxu0 %v1210
    %1352 = vmatprep.subr.mxu0 %v1213
    %1353 = vmatpush1.msra.mxu0 %v1212
    %1354 = vmatprep.subr.mxu0 %v1215
    %1355 = vmatpush1.msra.mxu0 %v1214
    %1356 = vmatprep.subr.mxu0 %v1217
    %1357 = vmatpush1.msra.mxu0 %v1216
    %1358 = vmatprep.subr.mxu0 %v1219
    %1359 = vmatpush1.msra.mxu0 %v1218
    %1360 = vmatprep.subr.mxu0 %v1221
    %1361 = vmatpush1.msra.mxu0 %v1220
    %1362 = vmatprep.subr.mxu0 %v1223
    %1363 = vmatpush1.msra.mxu0 %v1222
    %1364 = vmatprep.subr.mxu0 %v1225
    %1365 = vmatpush1.msra.mxu0 %v1224
    %1366 = vmatprep.subr.mxu0 %v1227
    %1367 = vmatpush1.msra.mxu0 %v1226
    %1368 = vmatprep.subr.mxu0 %v1229
    %1369 = vmatpush1.msra.mxu0 %v1228
    %1370 = vmatprep.subr.mxu0 %v1231
    %1371 = vmatpush1.msra.mxu0 %v1230
    %1372 = vmatprep.subr.mxu0 %v1233
    %1373 = vmatpush1.msra.mxu0 %v1232
    %1374 = vmatprep.subr.mxu0 %v1235
    %1375 = vmatpush1.msra.mxu0 %v1234
    %1376 = vmatprep.subr.mxu0 %v1237
    %1377 = vmatpush1.msra.mxu0 %v1236
    %1378 = vmatprep.subr.mxu0 %v1239
    %1379 = vmatpush1.msra.mxu0 %v1238
    %1380 = vmatprep.subr.mxu0 %v1241
    %1381 = vmatpush1.msra.mxu0 %v1240
    %1382 = vmatprep.subr.mxu0 %v1243
    %1383 = vmatpush1.msra.mxu0 %v1242
    %1384 = vmatprep.subr.mxu0 %v1245
    %1385 = vmatpush1.msra.mxu0 %v1244
    %1386 = vmatprep.subr.mxu0 %v1247
    %1387 = vmatpush1.msra.mxu0 %v1246
    %1388 = vmatprep.subr.mxu0 %v1249
    %1389 = vmatpush1.msra.mxu0 %v1248
    %1390 = vmatprep.subr.mxu0 %v1251
    %1391 = vmatpush1.msra.mxu0 %v1250
    %1392 = vmatprep.subr.mxu0 %v1253
    %1393 = vmatpush1.msra.mxu0 %v1252
    %1394 = vmatprep.mubr.f32.mxu0 %v975
    %1395 = vmatmul.mubr.f32.gmra.mrb[0].mxu0 %v973
    %v1396 = vpop.f32.mrb[0].mxu0
    %v1397 = vadd.f32 %v1323, %v1396
    %v1398 = vpop.f32.mrb[0].mxu0
    %v1399 = vadd.f32 %v1327, %v1398
    %1400 = vdwg.mxu0
    %1401 = vmatprep.subr.mxu0 %v1255
    %1402 = vmatpush1.msra.mxu0 %v1254
    %1403 = vmatprep.subr.mxu0 %v1257
    %1404 = vmatpush1.msra.mxu0 %v1256
    %1405 = vmatprep.subr.mxu0 %v1259
    %1406 = vmatpush1.msra.mxu0 %v1258
    %1407 = vmatprep.subr.mxu0 %v1261
    %1408 = vmatpush1.msra.mxu0 %v1260
    %1409 = vmatprep.subr.mxu0 %v1263
    %1410 = vmatpush1.msra.mxu0 %v1262
    %1411 = vmatprep.subr.mxu0 %v1265
    %1412 = vmatpush1.msra.mxu0 %v1264
    %1413 = vmatprep.subr.mxu0 %v1267
    %1414 = vmatpush1.msra.mxu0 %v1266
    %1415 = vmatprep.subr.mxu0 %v1269
    %1416 = vmatpush1.msra.mxu0 %v1268
    %1417 = vmatprep.subr.mxu0 %v1271
    %1418 = vmatpush1.msra.mxu0 %v1270
    %1419 = vmatprep.subr.mxu0 %v1273
    %1420 = vmatpush1.msra.mxu0 %v1272
    %1421 = vmatprep.subr.mxu0 %v1275
    %1422 = vmatpush1.msra.mxu0 %v1274
    %1423 = vmatprep.subr.mxu0 %v1277
    %1424 = vmatpush1.msra.mxu0 %v1276
    %1425 = vmatprep.subr.mxu0 %v1279
    %1426 = vmatpush1.msra.mxu0 %v1278
    %1427 = vmatprep.subr.mxu0 %v1281
    %1428 = vmatpush1.msra.mxu0 %v1280
    %1429 = vmatprep.subr.mxu0 %v1283
    %1430 = vmatpush1.msra.mxu0 %v1282
    %1431 = vmatprep.subr.mxu0 %v1285
    %1432 = vmatpush1.msra.mxu0 %v1284
    %1433 = vmatprep.subr.mxu0 %v1287
    %1434 = vmatpush1.msra.mxu0 %v1286
    %1435 = vmatprep.subr.mxu0 %v1289
    %1436 = vmatpush1.msra.mxu0 %v1288
    %1437 = vmatprep.subr.mxu0 %v1291
    %1438 = vmatpush1.msra.mxu0 %v1290
    %1439 = vmatprep.subr.mxu0 %v1293
    %1440 = vmatpush1.msra.mxu0 %v1292
    %1441 = vmatprep.subr.mxu0 %v1295
    %1442 = vmatpush1.msra.mxu0 %v1294
    %1443 = vmatprep.subr.mxu0 %v1297
    %1444 = vmatpush1.msra.mxu0 %v1296
    %1445 = vmatprep.subr.mxu0 %v1299
    %1446 = vmatpush1.msra.mxu0 %v1298
    %1447 = vmatprep.subr.mxu0 %v1301
    %1448 = vmatpush1.msra.mxu0 %v1300
    %1449 = vmatprep.subr.mxu0 %v1303
    %1450 = vmatpush1.msra.mxu0 %v1302
    %1451 = vmatprep.subr.mxu0 %v1305
    %1452 = vmatpush1.msra.mxu0 %v1304
    %1453 = vmatprep.subr.mxu0 %v1307
    %1454 = vmatpush1.msra.mxu0 %v1306
    %1455 = vmatprep.subr.mxu0 %v1309
    %1456 = vmatpush1.msra.mxu0 %v1308
    %1457 = vmatprep.subr.mxu0 %v1311
    %1458 = vmatpush1.msra.mxu0 %v1310
    %1459 = vmatprep.subr.mxu0 %v1313
    %1460 = vmatpush1.msra.mxu0 %v1312
    %1461 = vmatprep.subr.mxu0 %v1315
    %1462 = vmatpush1.msra.mxu0 %v1314
    %1463 = vmatprep.subr.mxu0 %v1317
    %1464 = vmatpush1.msra.mxu0 %v1316
    %1465 = vmatprep.mubr.f32.mxu0 %v1188
    %1466 = vmatmul.mubr.f32.gmra.mrb[0].mxu0 %v1186
    %v1467 = vpop.f32.mrb[0].mxu0
    %v1468 = vadd.f32 %v1397, %v1467
    %v1469 = vpop.f32.mrb[0].mxu0
    %v1470 = vadd.f32 %v1399, %v1469
    %1471 = vdwg.mxu0
    %v1472 = vadd.f32 %v1468, %v1470
    %1473 = vadd.xlane.f32.xlu0 %v1472
    %v1474 = vpop.xlane.xlu0 %1473
    %v1475 = vrcp.pop 256.0
    %v1476 = vmul.f32 %v1474, %v1475
    %v1477 = vsub.f32 %v1468, %v1476
    %v1478 = vsub.f32 %v1470, %v1476
    %v1479 = vmul.f32 %v1477, %v1477
    %v1480 = vmul.f32 %v1478, %v1478
    %v1481 = vadd.f32 %v1479, %v1480
    %1482 = vadd.xlane.f32.xlu0 %v1481
    %v1483 = vpop.xlane.xlu0 %1482
    %v1484 = vmul.f32 %v1483, %v1475
    %v1485 = vadd.f32 %v1484, 1e-05
    %v1486 = vrsqrt.pop %v1485
    %v1487 = vmul.f32 %v1477, %v1486
    %v1488 = vmul.f32 %v1478, %v1486
    %v1489 = vld [vmem:[%s7] sm:$0x3]
    %v1491 = vlaneseq
    %v1492 = vshrl.u32 %v1491, 7
    %v1493 = vsub.s32 0, %v1492
    %v1494 = vrot.slane %v1489, %v1493
    %v1495 = vlaneseq
    %v1496 = vshrl.u32 %v1495, 7
    %v1497 = vsub.s32 1, %v1496
    %v1498 = vrot.slane %v1489, %v1497
    %v1501 = vmul.f32 %v1487, %v1494
    %v1502 = vmul.f32 %v1488, %v1498
    %v1503 = vld [vmem:[%s8] sm:$0x3]
    %v1505 = vlaneseq
    %v1506 = vshrl.u32 %v1505, 7
    %v1507 = vsub.s32 0, %v1506
    %v1508 = vrot.slane %v1503, %v1507
    %v1509 = vlaneseq
    %v1510 = vshrl.u32 %v1509, 7
    %v1511 = vsub.s32 1, %v1510
    %v1512 = vrot.slane %v1503, %v1511
    %v1515 = vadd.f32 %v1501, %v1508
    %v1516 = vadd.f32 %v1502, %v1512
    %v1517 = vmul.f32 %v1515, 0.5
    %v1518 = vmul.f32 %v1516, 0.5
    %v1519 = vmul.f32 %v1515, 0.70710677
    %v1520 = vmul.f32 %v1516, 0.70710677
    %v1521 = verf.f32.pop %v1519
    %v1522 = verf.f32.pop %v1520
    %v1523 = vadd.f32 %v1521, 1.0
    %v1524 = vadd.f32 %v1522, 1.0
    %v1525 = vmul.f32 %v1517, %v1523
    %v1526 = vmul.f32 %v1518, %v1524
    %v1527 = vld [vmem:[%s9] sm:$0xff]
    %v1528 = vld [vmem:[%s9 + $0x8] sm:$0xff]
    %v1529 = vld [vmem:[%s9 + $0x10] sm:$0xff]
    %v1530 = vld [vmem:[%s9 + $0x18] sm:$0xff]
    %v1531 = vld [vmem:[%s9 + $0x20] sm:$0xff]
    %v1532 = vld [vmem:[%s9 + $0x28] sm:$0xff]
    %v1533 = vld [vmem:[%s9 + $0x30] sm:$0xff]
    %v1534 = vld [vmem:[%s9 + $0x38] sm:$0xff]
    %v1535 = vld [vmem:[%s9 + $0x40] sm:$0xff]
    %v1536 = vld [vmem:[%s9 + $0x48] sm:$0xff]
    %v1537 = vld [vmem:[%s9 + $0x50] sm:$0xff]
    %v1538 = vld [vmem:[%s9 + $0x58] sm:$0xff]
    %v1539 = vld [vmem:[%s9 + $0x60] sm:$0xff]
    %v1540 = vld [vmem:[%s9 + $0x68] sm:$0xff]
    %v1541 = vld [vmem:[%s9 + $0x70] sm:$0xff]
    %v1542 = vld [vmem:[%s9 + $0x78] sm:$0xff]
    %v1543 = vld [vmem:[%s9 + $0x80] sm:$0xff]
    %v1544 = vld [vmem:[%s9 + $0x88] sm:$0xff]
    %v1545 = vld [vmem:[%s9 + $0x90] sm:$0xff]
    %v1546 = vld [vmem:[%s9 + $0x98] sm:$0xff]
    %v1547 = vld [vmem:[%s9 + $0xa0] sm:$0xff]
    %v1548 = vld [vmem:[%s9 + $0xa8] sm:$0xff]
    %v1549 = vld [vmem:[%s9 + $0xb0] sm:$0xff]
    %v1550 = vld [vmem:[%s9 + $0xb8] sm:$0xff]
    %v1551 = vld [vmem:[%s9 + $0xc0] sm:$0xff]
    %v1552 = vld [vmem:[%s9 + $0xc8] sm:$0xff]
    %v1553 = vld [vmem:[%s9 + $0xd0] sm:$0xff]
    %v1554 = vld [vmem:[%s9 + $0xd8] sm:$0xff]
    %v1555 = vld [vmem:[%s9 + $0xe0] sm:$0xff]
    %v1556 = vld [vmem:[%s9 + $0xe8] sm:$0xff]
    %v1557 = vld [vmem:[%s9 + $0xf0] sm:$0xff]
    %v1558 = vld [vmem:[%s9 + $0xf8] sm:$0xff]
    %v1559 = vld [vmem:[%s10] sm:$0x1]
    %v1561 = vlaneseq
    %v1562 = vshrl.u32 %v1561, 7
    %v1563 = vsub.s32 0, %v1562
    %v1564 = vrot.slane %v1559, %v1563
    %1566 = vmatprep.subr.mxu0 0.0
    %1567 = vmatpush1.msra.mxu0 %v1527
    %1568 = vmatprep.subr.mxu0 0.0
    %1569 = vmatpush1.msra.mxu0 %v1528
    %1570 = vmatprep.subr.mxu0 0.0
    %1571 = vmatpush1.msra.mxu0 %v1529
    %1572 = vmatprep.subr.mxu0 0.0
    %1573 = vmatpush1.msra.mxu0 %v1530
    %1574 = vmatprep.subr.mxu0 0.0
    %1575 = vmatpush1.msra.mxu0 %v1531
    %1576 = vmatprep.subr.mxu0 0.0
    %1577 = vmatpush1.msra.mxu0 %v1532
    %1578 = vmatprep.subr.mxu0 0.0
    %1579 = vmatpush1.msra.mxu0 %v1533
    %1580 = vmatprep.subr.mxu0 0.0
    %1581 = vmatpush1.msra.mxu0 %v1534
    %1582 = vmatprep.subr.mxu0 0.0
    %1583 = vmatpush1.msra.mxu0 %v1535
    %1584 = vmatprep.subr.mxu0 0.0
    %1585 = vmatpush1.msra.mxu0 %v1536
    %1586 = vmatprep.subr.mxu0 0.0
    %1587 = vmatpush1.msra.mxu0 %v1537
    %1588 = vmatprep.subr.mxu0 0.0
    %1589 = vmatpush1.msra.mxu0 %v1538
    %1590 = vmatprep.subr.mxu0 0.0
    %1591 = vmatpush1.msra.mxu0 %v1539
    %1592 = vmatprep.subr.mxu0 0.0
    %1593 = vmatpush1.msra.mxu0 %v1540
    %1594 = vmatprep.subr.mxu0 0.0
    %1595 = vmatpush1.msra.mxu0 %v1541
    %1596 = vmatprep.subr.mxu0 0.0
    %1597 = vmatpush1.msra.mxu0 %v1542
    %1598 = vmatprep.subr.mxu0 0.0
    %1599 = vmatpush1.msra.mxu0 %v1543
    %1600 = vmatprep.subr.mxu0 0.0
    %1601 = vmatpush1.msra.mxu0 %v1544
    %1602 = vmatprep.subr.mxu0 0.0
    %1603 = vmatpush1.msra.mxu0 %v1545
    %1604 = vmatprep.subr.mxu0 0.0
    %1605 = vmatpush1.msra.mxu0 %v1546
    %1606 = vmatprep.subr.mxu0 0.0
    %1607 = vmatpush1.msra.mxu0 %v1547
    %1608 = vmatprep.subr.mxu0 0.0
    %1609 = vmatpush1.msra.mxu0 %v1548
    %1610 = vmatprep.subr.mxu0 0.0
    %1611 = vmatpush1.msra.mxu0 %v1549
    %1612 = vmatprep.subr.mxu0 0.0
    %1613 = vmatpush1.msra.mxu0 %v1550
    %1614 = vmatprep.subr.mxu0 0.0
    %1615 = vmatpush1.msra.mxu0 %v1551
    %1616 = vmatprep.subr.mxu0 0.0
    %1617 = vmatpush1.msra.mxu0 %v1552
    %1618 = vmatprep.subr.mxu0 0.0
    %1619 = vmatpush1.msra.mxu0 %v1553
    %1620 = vmatprep.subr.mxu0 0.0
    %1621 = vmatpush1.msra.mxu0 %v1554
    %1622 = vmatprep.subr.mxu0 0.0
    %1623 = vmatpush1.msra.mxu0 %v1555
    %1624 = vmatprep.subr.mxu0 0.0
    %1625 = vmatpush1.msra.mxu0 %v1556
    %1626 = vmatprep.subr.mxu0 0.0
    %1627 = vmatpush1.msra.mxu0 %v1557
    %1628 = vmatprep.subr.mxu0 0.0
    %1629 = vmatpush1.msra.mxu0 %v1558
    %1630 = vmatprep.mubr.f32.mxu0 %v1526
    %1631 = vmatmul.mubr.f32.gmra.mrb[0].mxu0 %v1525
    %v1632 = vpop.f32.mrb[0].mxu0
    %v1633 = vadd.f32 %v1564, %v1632
    %v1634 = vpop.f32.mrb[0].mxu0
    %1635 = vdwg.mxu0
    %v1636 = vadd.f32 %v1633, %v355
    %1637 = vst [vmem:[#allocation2] sm:$0xff] %v1636
    // Predicated region
    $region46: #{projection_forward.1} parent=1 // pred_check
      _
    $region47: #{projection_forward.1} parent=1 // pred_check_branch
      %1639 = sbr.rel (0) target = $region49
    $region48: #{projection_forward.1} parent=1 // pred_region
      %s1641 = ssub.s32 128, 128
      %1642 = vsyncadd [#allocation3], %s1641
      %s1644 = sshll.u32 [#allocation2], 4
      %s1645 = int_to_ptr.vmem [resolvable:$true] %s1644
      %1647 = dma.vmem_to_hbm [thread:$0]  %s1645, 128, %s11, [#allocation3]
    $region49: #{projection_forward.1} parent=1 // pred_fallthru
      _
    // Predicated region
    $region50: #{projection_forward.1} parent=1 // pred_check
      _
    $region51: #{projection_forward.1} parent=1 // pred_check_branch
      %1649 = sbr.rel (0) target = $region53
    $region52: #{projection_forward.1} parent=1 // pred_region
      %1650 = dma.done [#allocation3], 128
    $region53: #{projection_forward.1} parent=1 // pred_fallthru
      _
    %1651 = vsyncpa [#allocation3], 1

</llo_original>
